<compile_context>
chip_gen: v7x
topology: tpu7x:2x2x1
jax: 0.10.0
libtpu: 0.0.40
codegen_flags: <defaults>
</compile_context>

<pallas_src>
import functools

import jax
import jax.numpy as jnp
import numpy as np
from jax.experimental import pallas as pl
from jax.experimental.pallas import tpu as pltpu

# Model hyper-parameters (input_size = train_data.shape[2] in the original).
INPUT_SIZE = 16
HIDDEN_SIZE = 20
NUM_LAYERS = 2          # kernel unrolls both layers explicitly
OUTPUT_SIZE = 6
FC2_DIM = 128
FC1_DIM = 64

HP = 32                 # per-gate lane pad (H=20 -> 32)
GATE_PAD = 4 * HP       # 128: all four gates packed in one lane block [i,f,o,g]
B_PAD = 8               # batch padded to the native 8-sublane granule
HEAD_PAD = 128          # lane-dense MLP-head width


def _lstm_mlp_kernel(
    x_ref,                          # (T*B_PAD, D)   time-major, batch-padded input
    wih0_ref, whh0_ref, b0_ref,     # layer 0: (D, 128), (32, 128), (1, 128)
    w1cat_ref, b1_ref,              # layer 1 fused: (64, 128), (1, 128)
    w2_ref, b2_ref,                 # fc2: (32, 128), (1, 128)
    w1f_ref, b1f_ref,               # fc1: (128, 128) zero-padded, (1, 128)
    wf_ref, bf_ref,                 # fc : (128, 128) zero-padded, (1, 128)
    out_ref,                        # (2*B_PAD, 128); only rows {0,1,8,9}, lanes 0..5 valid
    *, t_steps: int,
):
    Bp = B_PAD
    SIG = 3 * HP                    # lanes [0, 96) are sigmoid gates (i,f,o); [96,128) is g

    # ---- Prologue: layer-0 input projection for ALL timesteps at once.
    # One MXU call off the serial chain; layer-0 bias folded in here.
    gx = (jnp.dot(x_ref[...], wih0_ref[...], preferred_element_type=jnp.float32)
          + b0_ref[...])                                     # (T*Bp, 128)

    whh0 = whh0_ref[...]                                     # (32, 128)
    w1cat = w1cat_ref[...]                                   # (64, 128)
    b1b = jnp.broadcast_to(b1_ref[...], (Bp, GATE_PAD))      # hoisted broadcast
    lane = jax.lax.broadcasted_iota(jnp.int32, (Bp, GATE_PAD), 1)
    sig_mask = lane < SIG                                     # hoisted lane mask

    def gate_act(g):
        # Sigmoid gates were pre-scaled by 0.5 in the weights/biases, so a
        # single whole-vreg tanh covers both activations:
        #   sigmoid(x) = 0.5*tanh(0.5*x) + 0.5 ; candidate gate is plain tanh.
        t = jnp.tanh(g)                                       # one EUP dispatch
        a = jnp.where(sig_mask, 0.5 * t + 0.5, t)
        # 32-lane, lane-aligned gate slices (XLU rotates; MXU/EUP stay the bottleneck)
        return a[:, 0:HP], a[:, HP:2 * HP], a[:, 2 * HP:3 * HP], a[:, 3 * HP:4 * HP]

    h0 = jnp.zeros((Bp, HP), jnp.float32)
    c0 = jnp.zeros((Bp, HP), jnp.float32)
    h1 = jnp.zeros((Bp, HP), jnp.float32)
    c1 = jnp.zeros((Bp, HP), jnp.float32)

    # Fully unrolled (T is static): layer-1 @ t and layer-0 @ t+1 are
    # data-independent, so the scheduler can interleave their MXU/EUP work.
    for t in range(t_steps):
        # layer 0: only the recurrent matmul (8,32)@(32,128) is on the serial path.
        g0 = gx[t * Bp:(t + 1) * Bp, :] + jnp.dot(
            h0, whh0, preferred_element_type=jnp.float32)
        i0, f0, o0, gg0 = gate_act(g0)
        c0 = f0 * c0 + i0 * gg0
        h0 = o0 * jnp.tanh(c0)

        # layer 1: single fused matmul [h0, h1] @ [W_ih1; W_hh1], K=64 (one tile).
        hcat = jnp.concatenate([h0, h1], axis=1)              # (Bp, 64)
        g1 = jnp.dot(hcat, w1cat, preferred_element_type=jnp.float32) + b1b
        i1, f1, o1, gg1 = gate_act(g1)
        c1 = f1 * c1 + i1 * gg1
        h1 = o1 * jnp.tanh(c1)

    # hn.view(-1, H): layer-major stacking -> [layer0 batch..., layer1 batch...]
    hn = jnp.concatenate([h0, h1], axis=0)                    # (2*Bp, 32), pad lanes = 0
    z = jnp.maximum(hn, 0.0)
    z = jnp.maximum(
        jnp.dot(z, w2_ref[...], preferred_element_type=jnp.float32) + b2_ref[...],
        0.0)
    z = jnp.maximum(
        jnp.dot(z, w1f_ref[...], preferred_element_type=jnp.float32) + b1f_ref[...],
        0.0)
    out_ref[...] = (
        jnp.dot(z, wf_ref[...], preferred_element_type=jnp.float32) + bf_ref[...])


def lstm_forward(x, kernel_params):
    """x: (B, T, D) float32. Returns (NUM_LAYERS*B, OUTPUT_SIZE) float32."""
    B, T, D = x.shape
    assert B <= B_PAD
    # Tiny layout prep outside the kernel: time-major + pad batch to 8 sublanes
    # so every per-step gx slice inside the kernel is a whole-tile read.
    x_tm = jnp.transpose(x, (1, 0, 2))                        # (T, B, D)
    x_tm = jnp.pad(x_tm, ((0, 0), (0, B_PAD - B), (0, 0)))    # (T, 8, D), pad rows zero
    x_flat = x_tm.reshape(T * B_PAD, D)

    n_in = 1 + len(kernel_params)
    kernel = functools.partial(_lstm_mlp_kernel, t_steps=T)
    out_padded = pl.pallas_call(
        kernel,
        out_shape=jax.ShapeDtypeStruct((NUM_LAYERS * B_PAD, HEAD_PAD), jnp.float32),
        in_specs=[pl.BlockSpec(memory_space=pltpu.MemorySpace.VMEM)] * n_in,
        out_specs=pl.BlockSpec(memory_space=pltpu.MemorySpace.VMEM),
    )(x_flat, *kernel_params)
    # Lane-dense, batch-padded kernel output; gather the valid rows/logits here.
    out = jnp.concatenate([out_padded[:B], out_padded[B_PAD:B_PAD + B]], axis=0)
    return out[:, :OUTPUT_SIZE]


def init_params(key):
    """Logical parameters (PyTorch-style uniform init), stored as (in, out).

    LSTM weights use PyTorch gate order (i, f, g, o).
    """
    H, D = HIDDEN_SIZE, INPUT_SIZE
    keys = jax.random.split(key, 14)
    k_lstm = H ** -0.5

    def u(k, shape, bound):
        return jax.random.uniform(k, shape, jnp.float32, -bound, bound)

    return dict(
        wih0=u(keys[0], (D, 4 * H), k_lstm),
        whh0=u(keys[1], (H, 4 * H), k_lstm),
        bih0=u(keys[2], (4 * H,), k_lstm),
        bhh0=u(keys[3], (4 * H,), k_lstm),
        wih1=u(keys[4], (H, 4 * H), k_lstm),
        whh1=u(keys[5], (H, 4 * H), k_lstm),
        bih1=u(keys[6], (4 * H,), k_lstm),
        bhh1=u(keys[7], (4 * H,), k_lstm),
        w2=u(keys[8], (H, FC2_DIM), H ** -0.5),
        b2=u(keys[9], (FC2_DIM,), H ** -0.5),
        w1=u(keys[10], (FC2_DIM, FC1_DIM), FC2_DIM ** -0.5),
        b1=u(keys[11], (FC1_DIM,), FC2_DIM ** -0.5),
        wf=u(keys[12], (FC1_DIM, OUTPUT_SIZE), FC1_DIM ** -0.5),
        bf=u(keys[13], (OUTPUT_SIZE,), FC1_DIM ** -0.5),
    )


def prepare_kernel_params(p):
    """Pad / reorder / fuse the logical params into the kernel layout.

    - Each gate is zero-padded to 32 lanes; order (i,f,g,o) -> (i,f,o,g) so all
      sigmoid gates occupy the contiguous lanes [0, 96).
    - Sigmoid-gate (i,f,o) weight columns and biases are pre-scaled by 0.5 so
      the kernel computes sigmoid(x) = 0.5*tanh(0.5*x) + 0.5 with one tanh.
    - LSTM biases b_ih + b_hh are pre-summed.
    - Layer-1 W_ih and W_hh are row-stacked (each padded to 32 rows) for the
      fused [h0, h1] matmul (K=64).
    - Zero padding keeps padded lanes exactly zero end-to-end: gate pre-acts of
      pad lanes are 0 -> sigmoid pads = 0.5, tanh pads = 0 -> h/c pad lanes
      stay 0, so nothing leaks into the fused layer-1 matmul or the MLP head.
    """
    H = HIDDEN_SIZE

    def pack_gate_mat(w, k_pad=None):
        # w: (K, 4H) in order (i,f,g,o) -> (K or k_pad, 128) in order (i,f,o,g)
        i, f, g, o = (w[:, n * H:(n + 1) * H] for n in range(4))
        blocks = (0.5 * i, 0.5 * f, 0.5 * o, g)       # pre-scale sigmoid gates
        out = jnp.concatenate(
            [jnp.pad(blk, ((0, 0), (0, HP - H))) for blk in blocks], axis=1)
        if k_pad is not None:
            out = jnp.pad(out, ((0, k_pad - out.shape[0]), (0, 0)))
        return out

    def pack_gate_vec(b):
        i, f, g, o = (b[n * H:(n + 1) * H] for n in range(4))
        blocks = (0.5 * i, 0.5 * f, 0.5 * o, g)
        return jnp.concatenate(
            [jnp.pad(v, (0, HP - H)) for v in blocks])[None, :]

    wih0_p = pack_gate_mat(p['wih0'])                     # (D, 128)
    whh0_p = pack_gate_mat(p['whh0'], k_pad=HP)           # (32, 128)
    b0_p = pack_gate_vec(p['bih0'] + p['bhh0'])           # (1, 128)

    wih1_p = pack_gate_mat(p['wih1'], k_pad=HP)           # (32, 128)
    whh1_p = pack_gate_mat(p['whh1'], k_pad=HP)           # (32, 128)
    w1cat_p = jnp.concatenate([wih1_p, whh1_p], axis=0)   # (64, 128)
    b1_p = pack_gate_vec(p['bih1'] + p['bhh1'])           # (1, 128)

    w2_p = jnp.pad(p['w2'], ((0, HP - H), (0, 0)))        # (32, 128)
    b2_p = p['b2'][None, :]                               # (1, 128)
    w1f_p = jnp.pad(p['w1'], ((0, 0), (0, HEAD_PAD - FC1_DIM)))            # (128, 128)
    b1f_p = jnp.pad(p['b1'], (0, HEAD_PAD - FC1_DIM))[None, :]             # (1, 128)
    wf_p = jnp.pad(p['wf'], ((0, HEAD_PAD - FC1_DIM),
                             (0, HEAD_PAD - OUTPUT_SIZE)))                 # (128, 128)
    bf_p = jnp.pad(p['bf'], (0, HEAD_PAD - OUTPUT_SIZE))[None, :]          # (1, 128)

    return (wih0_p, whh0_p, b0_p, w1cat_p, b1_p,
            w2_p, b2_p, w1f_p, b1f_p, wf_p, bf_p)


def reference_forward(x, p):
    """Pure-JAX reference with identical math (unpadded, PyTorch gate order)."""
    H = HIDDEN_SIZE
    B, T, _ = x.shape
    b0 = p['bih0'] + p['bhh0']
    b1 = p['bih1'] + p['bhh1']

    def cell(x_t, h, c, wih, whh, bias):
        g = x_t @ wih + h @ whh + bias
        i = jax.nn.sigmoid(g[:, 0 * H:1 * H])
        f = jax.nn.sigmoid(g[:, 1 * H:2 * H])
        gg = jnp.tanh(g[:, 2 * H:3 * H])
        o = jax.nn.sigmoid(g[:, 3 * H:4 * H])
        c = f * c + i * gg
        return o * jnp.tanh(c), c

    h0 = c0 = h1 = c1 = jnp.zeros((B, H), jnp.float32)
    for t in range(T):
        x_t = x[:, t, :]
        h0, c0 = cell(x_t, h0, c0, p['wih0'], p['whh0'], b0)
        h1, c1 = cell(h0, h1, c1, p['wih1'], p['whh1'], b1)

    hn = jnp.concatenate([h0, h1], axis=0)
    z = jnp.maximum(hn, 0.0)
    z = jnp.maximum(z @ p['w2'] + p['b2'], 0.0)
    z = jnp.maximum(z @ p['w1'] + p['b1'], 0.0)
    return z @ p['wf'] + p['bf']


if __name__ == "__main__":
    key = jax.random.PRNGKey(0)
    k_x, k_p = jax.random.split(key)

    B, T = 2, 8
    x = jax.random.normal(k_x, (B, T, INPUT_SIZE), jnp.float32)
    params = init_params(k_p)
    kernel_params = prepare_kernel_params(params)

    out = jax.block_until_ready(lstm_forward(x, kernel_params))
    ref = jax.block_until_ready(reference_forward(x, params))

    assert out.shape == (NUM_LAYERS * B, OUTPUT_SIZE), out.shape
    # atol slightly relaxed vs f32 reference because the kernel computes
    # sigmoid via the (mathematically equivalent) scaled-tanh form.
    np.testing.assert_allclose(np.asarray(out), np.asarray(ref), rtol=1e-4, atol=5e-5)

    print("KERNEL_OK")
</pallas_src>

<mosaic_0001>
module attributes {stable_mosaic.version = 11 : i64} {
  func.func @_lstm_mlp_kernel(%arg0: memref<64x16xf32, #tpu.memory_space<vmem>>, %arg1: memref<16x128xf32, #tpu.memory_space<vmem>>, %arg2: memref<32x128xf32, #tpu.memory_space<vmem>>, %arg3: memref<1x128xf32, #tpu.memory_space<vmem>>, %arg4: memref<64x128xf32, #tpu.memory_space<vmem>>, %arg5: memref<1x128xf32, #tpu.memory_space<vmem>>, %arg6: memref<32x128xf32, #tpu.memory_space<vmem>>, %arg7: memref<1x128xf32, #tpu.memory_space<vmem>>, %arg8: memref<128x128xf32, #tpu.memory_space<vmem>>, %arg9: memref<1x128xf32, #tpu.memory_space<vmem>>, %arg10: memref<128x128xf32, #tpu.memory_space<vmem>>, %arg11: memref<1x128xf32, #tpu.memory_space<vmem>>, %arg12: memref<16x128xf32, #tpu.memory_space<vmem>>) attributes {dimension_semantics = [], scalar_prefetch = 0 : i64, scratch_operands = 0 : i64, tpu.core_type = #tpu.core_type<tc>} {
    %c0 = arith.constant 0 : index
    %c0_0 = arith.constant 0 : index
    %0 = vector.load %arg0[%c0, %c0_0] : memref<64x16xf32, #tpu.memory_space<vmem>>, vector<64x16xf32>
    %c0_1 = arith.constant 0 : index
    %c0_2 = arith.constant 0 : index
    %1 = vector.load %arg1[%c0_1, %c0_2] : memref<16x128xf32, #tpu.memory_space<vmem>>, vector<16x128xf32>
    %cst = arith.constant dense<0.000000e+00> : vector<64x128xf32>
    %2 = tpu.matmul %0, %1, %cst {dimension_numbers = #tpu.dot_dimension_numbers<[1], [0], [0], [1], [0, 0, 1, 1], [], []>} : vector<64x16xf32>, vector<16x128xf32>, vector<64x128xf32> -> vector<64x128xf32>
    %c0_3 = arith.constant 0 : index
    %c0_4 = arith.constant 0 : index
    %3 = vector.load %arg3[%c0_3, %c0_4] : memref<1x128xf32, #tpu.memory_space<vmem>>, vector<1x128xf32>
    %4 = vector.broadcast %3 : vector<1x128xf32> to vector<64x128xf32>
    %5 = arith.addf %2, %4 : vector<64x128xf32>
    %c0_5 = arith.constant 0 : index
    %c0_6 = arith.constant 0 : index
    %6 = vector.load %arg2[%c0_5, %c0_6] : memref<32x128xf32, #tpu.memory_space<vmem>>, vector<32x128xf32>
    %c0_7 = arith.constant 0 : index
    %c0_8 = arith.constant 0 : index
    %7 = vector.load %arg4[%c0_7, %c0_8] : memref<64x128xf32, #tpu.memory_space<vmem>>, vector<64x128xf32>
    %c0_9 = arith.constant 0 : index
    %c0_10 = arith.constant 0 : index
    %8 = vector.load %arg5[%c0_9, %c0_10] : memref<1x128xf32, #tpu.memory_space<vmem>>, vector<1x128xf32>
    %9 = vector.shape_cast %8 : vector<1x128xf32> to vector<1x128xf32>
    %10 = vector.broadcast %9 : vector<1x128xf32> to vector<8x128xf32>
    %11 = tpu.iota {dimensions = array<i32: 1>} : vector<8x128xi32>
    %c96_i32 = arith.constant 96 : i32
    %12 = vector.broadcast %c96_i32 : i32 to vector<8x128xi32>
    %13 = arith.cmpi slt, %11, %12 : vector<8x128xi32>
    %cst_11 = arith.constant 0.000000e+00 : f32
    %14 = vector.broadcast %cst_11 : f32 to vector<8x32xf32>
    %cst_12 = arith.constant 0.000000e+00 : f32
    %15 = vector.broadcast %cst_12 : f32 to vector<8x32xf32>
    %cst_13 = arith.constant 0.000000e+00 : f32
    %16 = vector.broadcast %cst_13 : f32 to vector<8x32xf32>
    %cst_14 = arith.constant 0.000000e+00 : f32
    %17 = vector.broadcast %cst_14 : f32 to vector<8x32xf32>
    %18 = vector.extract_strided_slice %5 {offsets = [0, 0], sizes = [8, 128], strides = [1, 1]} : vector<64x128xf32> to vector<8x128xf32>
    %cst_15 = arith.constant dense<0.000000e+00> : vector<8x128xf32>
    %19 = tpu.matmul %14, %6, %cst_15 {dimension_numbers = #tpu.dot_dimension_numbers<[1], [0], [0], [1], [0, 0, 1, 1], [], []>} : vector<8x32xf32>, vector<32x128xf32>, vector<8x128xf32> -> vector<8x128xf32>
    %20 = arith.addf %18, %19 : vector<8x128xf32>
    %21 = math.tanh %20 : vector<8x128xf32>
    %cst_16 = arith.constant 5.000000e-01 : f32
    %22 = vector.broadcast %cst_16 : f32 to vector<8x128xf32>
    %23 = arith.mulf %22, %21 : vector<8x128xf32>
    %cst_17 = arith.constant 5.000000e-01 : f32
    %24 = vector.broadcast %cst_17 : f32 to vector<8x128xf32>
    %25 = arith.addf %23, %24 : vector<8x128xf32>
    %26 = arith.select %13, %25, %21 : vector<8x128xi1>, vector<8x128xf32>
    %27 = vector.extract_strided_slice %26 {offsets = [0, 0], sizes = [8, 32], strides = [1, 1]} : vector<8x128xf32> to vector<8x32xf32>
    %28 = vector.extract_strided_slice %26 {offsets = [0, 32], sizes = [8, 32], strides = [1, 1]} : vector<8x128xf32> to vector<8x32xf32>
    %29 = vector.extract_strided_slice %26 {offsets = [0, 64], sizes = [8, 32], strides = [1, 1]} : vector<8x128xf32> to vector<8x32xf32>
    %30 = vector.extract_strided_slice %26 {offsets = [0, 96], sizes = [8, 32], strides = [1, 1]} : vector<8x128xf32> to vector<8x32xf32>
    %31 = arith.mulf %28, %15 : vector<8x32xf32>
    %32 = arith.mulf %27, %30 : vector<8x32xf32>
    %33 = arith.addf %31, %32 : vector<8x32xf32>
    %34 = math.tanh %33 : vector<8x32xf32>
    %35 = arith.mulf %29, %34 : vector<8x32xf32>
    %36 = tpu.concatenate %35, %16 in 1 : vector<8x32xf32>, vector<8x32xf32> -> vector<8x64xf32>
    %cst_18 = arith.constant dense<0.000000e+00> : vector<8x128xf32>
    %37 = tpu.matmul %36, %7, %cst_18 {dimension_numbers = #tpu.dot_dimension_numbers<[1], [0], [0], [1], [0, 0, 1, 1], [], []>} : vector<8x64xf32>, vector<64x128xf32>, vector<8x128xf32> -> vector<8x128xf32>
    %38 = arith.addf %37, %10 : vector<8x128xf32>
    %39 = math.tanh %38 : vector<8x128xf32>
    %cst_19 = arith.constant 5.000000e-01 : f32
    %40 = vector.broadcast %cst_19 : f32 to vector<8x128xf32>
    %41 = arith.mulf %40, %39 : vector<8x128xf32>
    %cst_20 = arith.constant 5.000000e-01 : f32
    %42 = vector.broadcast %cst_20 : f32 to vector<8x128xf32>
    %43 = arith.addf %41, %42 : vector<8x128xf32>
    %44 = arith.select %13, %43, %39 : vector<8x128xi1>, vector<8x128xf32>
    %45 = vector.extract_strided_slice %44 {offsets = [0, 0], sizes = [8, 32], strides = [1, 1]} : vector<8x128xf32> to vector<8x32xf32>
    %46 = vector.extract_strided_slice %44 {offsets = [0, 32], sizes = [8, 32], strides = [1, 1]} : vector<8x128xf32> to vector<8x32xf32>
    %47 = vector.extract_strided_slice %44 {offsets = [0, 64], sizes = [8, 32], strides = [1, 1]} : vector<8x128xf32> to vector<8x32xf32>
    %48 = vector.extract_strided_slice %44 {offsets = [0, 96], sizes = [8, 32], strides = [1, 1]} : vector<8x128xf32> to vector<8x32xf32>
    %49 = arith.mulf %46, %17 : vector<8x32xf32>
    %50 = arith.mulf %45, %48 : vector<8x32xf32>
    %51 = arith.addf %49, %50 : vector<8x32xf32>
    %52 = math.tanh %51 : vector<8x32xf32>
    %53 = arith.mulf %47, %52 : vector<8x32xf32>
    %54 = vector.extract_strided_slice %5 {offsets = [8, 0], sizes = [8, 128], strides = [1, 1]} : vector<64x128xf32> to vector<8x128xf32>
    %cst_21 = arith.constant dense<0.000000e+00> : vector<8x128xf32>
    %55 = tpu.matmul %35, %6, %cst_21 {dimension_numbers = #tpu.dot_dimension_numbers<[1], [0], [0], [1], [0, 0, 1, 1], [], []>} : vector<8x32xf32>, vector<32x128xf32>, vector<8x128xf32> -> vector<8x128xf32>
    %56 = arith.addf %54, %55 : vector<8x128xf32>
    %57 = math.tanh %56 : vector<8x128xf32>
    %cst_22 = arith.constant 5.000000e-01 : f32
    %58 = vector.broadcast %cst_22 : f32 to vector<8x128xf32>
    %59 = arith.mulf %58, %57 : vector<8x128xf32>
    %cst_23 = arith.constant 5.000000e-01 : f32
    %60 = vector.broadcast %cst_23 : f32 to vector<8x128xf32>
    %61 = arith.addf %59, %60 : vector<8x128xf32>
    %62 = arith.select %13, %61, %57 : vector<8x128xi1>, vector<8x128xf32>
    %63 = vector.extract_strided_slice %62 {offsets = [0, 0], sizes = [8, 32], strides = [1, 1]} : vector<8x128xf32> to vector<8x32xf32>
    %64 = vector.extract_strided_slice %62 {offsets = [0, 32], sizes = [8, 32], strides = [1, 1]} : vector<8x128xf32> to vector<8x32xf32>
    %65 = vector.extract_strided_slice %62 {offsets = [0, 64], sizes = [8, 32], strides = [1, 1]} : vector<8x128xf32> to vector<8x32xf32>
    %66 = vector.extract_strided_slice %62 {offsets = [0, 96], sizes = [8, 32], strides = [1, 1]} : vector<8x128xf32> to vector<8x32xf32>
    %67 = arith.mulf %64, %33 : vector<8x32xf32>
    %68 = arith.mulf %63, %66 : vector<8x32xf32>
    %69 = arith.addf %67, %68 : vector<8x32xf32>
    %70 = math.tanh %69 : vector<8x32xf32>
    %71 = arith.mulf %65, %70 : vector<8x32xf32>
    %72 = tpu.concatenate %71, %53 in 1 : vector<8x32xf32>, vector<8x32xf32> -> vector<8x64xf32>
    %cst_24 = arith.constant dense<0.000000e+00> : vector<8x128xf32>
    %73 = tpu.matmul %72, %7, %cst_24 {dimension_numbers = #tpu.dot_dimension_numbers<[1], [0], [0], [1], [0, 0, 1, 1], [], []>} : vector<8x64xf32>, vector<64x128xf32>, vector<8x128xf32> -> vector<8x128xf32>
    %74 = arith.addf %73, %10 : vector<8x128xf32>
    %75 = math.tanh %74 : vector<8x128xf32>
    %cst_25 = arith.constant 5.000000e-01 : f32
    %76 = vector.broadcast %cst_25 : f32 to vector<8x128xf32>
    %77 = arith.mulf %76, %75 : vector<8x128xf32>
    %cst_26 = arith.constant 5.000000e-01 : f32
    %78 = vector.broadcast %cst_26 : f32 to vector<8x128xf32>
    %79 = arith.addf %77, %78 : vector<8x128xf32>
    %80 = arith.select %13, %79, %75 : vector<8x128xi1>, vector<8x128xf32>
    %81 = vector.extract_strided_slice %80 {offsets = [0, 0], sizes = [8, 32], strides = [1, 1]} : vector<8x128xf32> to vector<8x32xf32>
    %82 = vector.extract_strided_slice %80 {offsets = [0, 32], sizes = [8, 32], strides = [1, 1]} : vector<8x128xf32> to vector<8x32xf32>
    %83 = vector.extract_strided_slice %80 {offsets = [0, 64], sizes = [8, 32], strides = [1, 1]} : vector<8x128xf32> to vector<8x32xf32>
    %84 = vector.extract_strided_slice %80 {offsets = [0, 96], sizes = [8, 32], strides = [1, 1]} : vector<8x128xf32> to vector<8x32xf32>
    %85 = arith.mulf %82, %51 : vector<8x32xf32>
    %86 = arith.mulf %81, %84 : vector<8x32xf32>
    %87 = arith.addf %85, %86 : vector<8x32xf32>
    %88 = math.tanh %87 : vector<8x32xf32>
    %89 = arith.mulf %83, %88 : vector<8x32xf32>
    %90 = vector.extract_strided_slice %5 {offsets = [16, 0], sizes = [8, 128], strides = [1, 1]} : vector<64x128xf32> to vector<8x128xf32>
    %cst_27 = arith.constant dense<0.000000e+00> : vector<8x128xf32>
    %91 = tpu.matmul %71, %6, %cst_27 {dimension_numbers = #tpu.dot_dimension_numbers<[1], [0], [0], [1], [0, 0, 1, 1], [], []>} : vector<8x32xf32>, vector<32x128xf32>, vector<8x128xf32> -> vector<8x128xf32>
    %92 = arith.addf %90, %91 : vector<8x128xf32>
    %93 = math.tanh %92 : vector<8x128xf32>
    %cst_28 = arith.constant 5.000000e-01 : f32
    %94 = vector.broadcast %cst_28 : f32 to vector<8x128xf32>
    %95 = arith.mulf %94, %93 : vector<8x128xf32>
    %cst_29 = arith.constant 5.000000e-01 : f32
    %96 = vector.broadcast %cst_29 : f32 to vector<8x128xf32>
    %97 = arith.addf %95, %96 : vector<8x128xf32>
    %98 = arith.select %13, %97, %93 : vector<8x128xi1>, vector<8x128xf32>
    %99 = vector.extract_strided_slice %98 {offsets = [0, 0], sizes = [8, 32], strides = [1, 1]} : vector<8x128xf32> to vector<8x32xf32>
    %100 = vector.extract_strided_slice %98 {offsets = [0, 32], sizes = [8, 32], strides = [1, 1]} : vector<8x128xf32> to vector<8x32xf32>
    %101 = vector.extract_strided_slice %98 {offsets = [0, 64], sizes = [8, 32], strides = [1, 1]} : vector<8x128xf32> to vector<8x32xf32>
    %102 = vector.extract_strided_slice %98 {offsets = [0, 96], sizes = [8, 32], strides = [1, 1]} : vector<8x128xf32> to vector<8x32xf32>
    %103 = arith.mulf %100, %69 : vector<8x32xf32>
    %104 = arith.mulf %99, %102 : vector<8x32xf32>
    %105 = arith.addf %103, %104 : vector<8x32xf32>
    %106 = math.tanh %105 : vector<8x32xf32>
    %107 = arith.mulf %101, %106 : vector<8x32xf32>
    %108 = tpu.concatenate %107, %89 in 1 : vector<8x32xf32>, vector<8x32xf32> -> vector<8x64xf32>
    %cst_30 = arith.constant dense<0.000000e+00> : vector<8x128xf32>
    %109 = tpu.matmul %108, %7, %cst_30 {dimension_numbers = #tpu.dot_dimension_numbers<[1], [0], [0], [1], [0, 0, 1, 1], [], []>} : vector<8x64xf32>, vector<64x128xf32>, vector<8x128xf32> -> vector<8x128xf32>
    %110 = arith.addf %109, %10 : vector<8x128xf32>
    %111 = math.tanh %110 : vector<8x128xf32>
    %cst_31 = arith.constant 5.000000e-01 : f32
    %112 = vector.broadcast %cst_31 : f32 to vector<8x128xf32>
    %113 = arith.mulf %112, %111 : vector<8x128xf32>
    %cst_32 = arith.constant 5.000000e-01 : f32
    %114 = vector.broadcast %cst_32 : f32 to vector<8x128xf32>
    %115 = arith.addf %113, %114 : vector<8x128xf32>
    %116 = arith.select %13, %115, %111 : vector<8x128xi1>, vector<8x128xf32>
    %117 = vector.extract_strided_slice %116 {offsets = [0, 0], sizes = [8, 32], strides = [1, 1]} : vector<8x128xf32> to vector<8x32xf32>
    %118 = vector.extract_strided_slice %116 {offsets = [0, 32], sizes = [8, 32], strides = [1, 1]} : vector<8x128xf32> to vector<8x32xf32>
    %119 = vector.extract_strided_slice %116 {offsets = [0, 64], sizes = [8, 32], strides = [1, 1]} : vector<8x128xf32> to vector<8x32xf32>
    %120 = vector.extract_strided_slice %116 {offsets = [0, 96], sizes = [8, 32], strides = [1, 1]} : vector<8x128xf32> to vector<8x32xf32>
    %121 = arith.mulf %118, %87 : vector<8x32xf32>
    %122 = arith.mulf %117, %120 : vector<8x32xf32>
    %123 = arith.addf %121, %122 : vector<8x32xf32>
    %124 = math.tanh %123 : vector<8x32xf32>
    %125 = arith.mulf %119, %124 : vector<8x32xf32>
    %126 = vector.extract_strided_slice %5 {offsets = [24, 0], sizes = [8, 128], strides = [1, 1]} : vector<64x128xf32> to vector<8x128xf32>
    %cst_33 = arith.constant dense<0.000000e+00> : vector<8x128xf32>
    %127 = tpu.matmul %107, %6, %cst_33 {dimension_numbers = #tpu.dot_dimension_numbers<[1], [0], [0], [1], [0, 0, 1, 1], [], []>} : vector<8x32xf32>, vector<32x128xf32>, vector<8x128xf32> -> vector<8x128xf32>
    %128 = arith.addf %126, %127 : vector<8x128xf32>
    %129 = math.tanh %128 : vector<8x128xf32>
    %cst_34 = arith.constant 5.000000e-01 : f32
    %130 = vector.broadcast %cst_34 : f32 to vector<8x128xf32>
    %131 = arith.mulf %130, %129 : vector<8x128xf32>
    %cst_35 = arith.constant 5.000000e-01 : f32
    %132 = vector.broadcast %cst_35 : f32 to vector<8x128xf32>
    %133 = arith.addf %131, %132 : vector<8x128xf32>
    %134 = arith.select %13, %133, %129 : vector<8x128xi1>, vector<8x128xf32>
    %135 = vector.extract_strided_slice %134 {offsets = [0, 0], sizes = [8, 32], strides = [1, 1]} : vector<8x128xf32> to vector<8x32xf32>
    %136 = vector.extract_strided_slice %134 {offsets = [0, 32], sizes = [8, 32], strides = [1, 1]} : vector<8x128xf32> to vector<8x32xf32>
    %137 = vector.extract_strided_slice %134 {offsets = [0, 64], sizes = [8, 32], strides = [1, 1]} : vector<8x128xf32> to vector<8x32xf32>
    %138 = vector.extract_strided_slice %134 {offsets = [0, 96], sizes = [8, 32], strides = [1, 1]} : vector<8x128xf32> to vector<8x32xf32>
    %139 = arith.mulf %136, %105 : vector<8x32xf32>
    %140 = arith.mulf %135, %138 : vector<8x32xf32>
    %141 = arith.addf %139, %140 : vector<8x32xf32>
    %142 = math.tanh %141 : vector<8x32xf32>
    %143 = arith.mulf %137, %142 : vector<8x32xf32>
    %144 = tpu.concatenate %143, %125 in 1 : vector<8x32xf32>, vector<8x32xf32> -> vector<8x64xf32>
    %cst_36 = arith.constant dense<0.000000e+00> : vector<8x128xf32>
    %145 = tpu.matmul %144, %7, %cst_36 {dimension_numbers = #tpu.dot_dimension_numbers<[1], [0], [0], [1], [0, 0, 1, 1], [], []>} : vector<8x64xf32>, vector<64x128xf32>, vector<8x128xf32> -> vector<8x128xf32>
    %146 = arith.addf %145, %10 : vector<8x128xf32>
    %147 = math.tanh %146 : vector<8x128xf32>
    %cst_37 = arith.constant 5.000000e-01 : f32
    %148 = vector.broadcast %cst_37 : f32 to vector<8x128xf32>
    %149 = arith.mulf %148, %147 : vector<8x128xf32>
    %cst_38 = arith.constant 5.000000e-01 : f32
    %150 = vector.broadcast %cst_38 : f32 to vector<8x128xf32>
    %151 = arith.addf %149, %150 : vector<8x128xf32>
    %152 = arith.select %13, %151, %147 : vector<8x128xi1>, vector<8x128xf32>
    %153 = vector.extract_strided_slice %152 {offsets = [0, 0], sizes = [8, 32], strides = [1, 1]} : vector<8x128xf32> to vector<8x32xf32>
    %154 = vector.extract_strided_slice %152 {offsets = [0, 32], sizes = [8, 32], strides = [1, 1]} : vector<8x128xf32> to vector<8x32xf32>
    %155 = vector.extract_strided_slice %152 {offsets = [0, 64], sizes = [8, 32], strides = [1, 1]} : vector<8x128xf32> to vector<8x32xf32>
    %156 = vector.extract_strided_slice %152 {offsets = [0, 96], sizes = [8, 32], strides = [1, 1]} : vector<8x128xf32> to vector<8x32xf32>
    %157 = arith.mulf %154, %123 : vector<8x32xf32>
    %158 = arith.mulf %153, %156 : vector<8x32xf32>
    %159 = arith.addf %157, %158 : vector<8x32xf32>
    %160 = math.tanh %159 : vector<8x32xf32>
    %161 = arith.mulf %155, %160 : vector<8x32xf32>
    %162 = vector.extract_strided_slice %5 {offsets = [32, 0], sizes = [8, 128], strides = [1, 1]} : vector<64x128xf32> to vector<8x128xf32>
    %cst_39 = arith.constant dense<0.000000e+00> : vector<8x128xf32>
    %163 = tpu.matmul %143, %6, %cst_39 {dimension_numbers = #tpu.dot_dimension_numbers<[1], [0], [0], [1], [0, 0, 1, 1], [], []>} : vector<8x32xf32>, vector<32x128xf32>, vector<8x128xf32> -> vector<8x128xf32>
    %164 = arith.addf %162, %163 : vector<8x128xf32>
    %165 = math.tanh %164 : vector<8x128xf32>
    %cst_40 = arith.constant 5.000000e-01 : f32
    %166 = vector.broadcast %cst_40 : f32 to vector<8x128xf32>
    %167 = arith.mulf %166, %165 : vector<8x128xf32>
    %cst_41 = arith.constant 5.000000e-01 : f32
    %168 = vector.broadcast %cst_41 : f32 to vector<8x128xf32>
    %169 = arith.addf %167, %168 : vector<8x128xf32>
    %170 = arith.select %13, %169, %165 : vector<8x128xi1>, vector<8x128xf32>
    %171 = vector.extract_strided_slice %170 {offsets = [0, 0], sizes = [8, 32], strides = [1, 1]} : vector<8x128xf32> to vector<8x32xf32>
    %172 = vector.extract_strided_slice %170 {offsets = [0, 32], sizes = [8, 32], strides = [1, 1]} : vector<8x128xf32> to vector<8x32xf32>
    %173 = vector.extract_strided_slice %170 {offsets = [0, 64], sizes = [8, 32], strides = [1, 1]} : vector<8x128xf32> to vector<8x32xf32>
    %174 = vector.extract_strided_slice %170 {offsets = [0, 96], sizes = [8, 32], strides = [1, 1]} : vector<8x128xf32> to vector<8x32xf32>
    %175 = arith.mulf %172, %141 : vector<8x32xf32>
    %176 = arith.mulf %171, %174 : vector<8x32xf32>
    %177 = arith.addf %175, %176 : vector<8x32xf32>
    %178 = math.tanh %177 : vector<8x32xf32>
    %179 = arith.mulf %173, %178 : vector<8x32xf32>
    %180 = tpu.concatenate %179, %161 in 1 : vector<8x32xf32>, vector<8x32xf32> -> vector<8x64xf32>
    %cst_42 = arith.constant dense<0.000000e+00> : vector<8x128xf32>
    %181 = tpu.matmul %180, %7, %cst_42 {dimension_numbers = #tpu.dot_dimension_numbers<[1], [0], [0], [1], [0, 0, 1, 1], [], []>} : vector<8x64xf32>, vector<64x128xf32>, vector<8x128xf32> -> vector<8x128xf32>
    %182 = arith.addf %181, %10 : vector<8x128xf32>
    %183 = math.tanh %182 : vector<8x128xf32>
    %cst_43 = arith.constant 5.000000e-01 : f32
    %184 = vector.broadcast %cst_43 : f32 to vector<8x128xf32>
    %185 = arith.mulf %184, %183 : vector<8x128xf32>
    %cst_44 = arith.constant 5.000000e-01 : f32
    %186 = vector.broadcast %cst_44 : f32 to vector<8x128xf32>
    %187 = arith.addf %185, %186 : vector<8x128xf32>
    %188 = arith.select %13, %187, %183 : vector<8x128xi1>, vector<8x128xf32>
    %189 = vector.extract_strided_slice %188 {offsets = [0, 0], sizes = [8, 32], strides = [1, 1]} : vector<8x128xf32> to vector<8x32xf32>
    %190 = vector.extract_strided_slice %188 {offsets = [0, 32], sizes = [8, 32], strides = [1, 1]} : vector<8x128xf32> to vector<8x32xf32>
    %191 = vector.extract_strided_slice %188 {offsets = [0, 64], sizes = [8, 32], strides = [1, 1]} : vector<8x128xf32> to vector<8x32xf32>
    %192 = vector.extract_strided_slice %188 {offsets = [0, 96], sizes = [8, 32], strides = [1, 1]} : vector<8x128xf32> to vector<8x32xf32>
    %193 = arith.mulf %190, %159 : vector<8x32xf32>
    %194 = arith.mulf %189, %192 : vector<8x32xf32>
    %195 = arith.addf %193, %194 : vector<8x32xf32>
    %196 = math.tanh %195 : vector<8x32xf32>
    %197 = arith.mulf %191, %196 : vector<8x32xf32>
    %198 = vector.extract_strided_slice %5 {offsets = [40, 0], sizes = [8, 128], strides = [1, 1]} : vector<64x128xf32> to vector<8x128xf32>
    %cst_45 = arith.constant dense<0.000000e+00> : vector<8x128xf32>
    %199 = tpu.matmul %179, %6, %cst_45 {dimension_numbers = #tpu.dot_dimension_numbers<[1], [0], [0], [1], [0, 0, 1, 1], [], []>} : vector<8x32xf32>, vector<32x128xf32>, vector<8x128xf32> -> vector<8x128xf32>
    %200 = arith.addf %198, %199 : vector<8x128xf32>
    %201 = math.tanh %200 : vector<8x128xf32>
    %cst_46 = arith.constant 5.000000e-01 : f32
    %202 = vector.broadcast %cst_46 : f32 to vector<8x128xf32>
    %203 = arith.mulf %202, %201 : vector<8x128xf32>
    %cst_47 = arith.constant 5.000000e-01 : f32
    %204 = vector.broadcast %cst_47 : f32 to vector<8x128xf32>
    %205 = arith.addf %203, %204 : vector<8x128xf32>
    %206 = arith.select %13, %205, %201 : vector<8x128xi1>, vector<8x128xf32>
    %207 = vector.extract_strided_slice %206 {offsets = [0, 0], sizes = [8, 32], strides = [1, 1]} : vector<8x128xf32> to vector<8x32xf32>
    %208 = vector.extract_strided_slice %206 {offsets = [0, 32], sizes = [8, 32], strides = [1, 1]} : vector<8x128xf32> to vector<8x32xf32>
    %209 = vector.extract_strided_slice %206 {offsets = [0, 64], sizes = [8, 32], strides = [1, 1]} : vector<8x128xf32> to vector<8x32xf32>
    %210 = vector.extract_strided_slice %206 {offsets = [0, 96], sizes = [8, 32], strides = [1, 1]} : vector<8x128xf32> to vector<8x32xf32>
    %211 = arith.mulf %208, %177 : vector<8x32xf32>
    %212 = arith.mulf %207, %210 : vector<8x32xf32>
    %213 = arith.addf %211, %212 : vector<8x32xf32>
    %214 = math.tanh %213 : vector<8x32xf32>
    %215 = arith.mulf %209, %214 : vector<8x32xf32>
    %216 = tpu.concatenate %215, %197 in 1 : vector<8x32xf32>, vector<8x32xf32> -> vector<8x64xf32>
    %cst_48 = arith.constant dense<0.000000e+00> : vector<8x128xf32>
    %217 = tpu.matmul %216, %7, %cst_48 {dimension_numbers = #tpu.dot_dimension_numbers<[1], [0], [0], [1], [0, 0, 1, 1], [], []>} : vector<8x64xf32>, vector<64x128xf32>, vector<8x128xf32> -> vector<8x128xf32>
    %218 = arith.addf %217, %10 : vector<8x128xf32>
    %219 = math.tanh %218 : vector<8x128xf32>
    %cst_49 = arith.constant 5.000000e-01 : f32
    %220 = vector.broadcast %cst_49 : f32 to vector<8x128xf32>
    %221 = arith.mulf %220, %219 : vector<8x128xf32>
    %cst_50 = arith.constant 5.000000e-01 : f32
    %222 = vector.broadcast %cst_50 : f32 to vector<8x128xf32>
    %223 = arith.addf %221, %222 : vector<8x128xf32>
    %224 = arith.select %13, %223, %219 : vector<8x128xi1>, vector<8x128xf32>
    %225 = vector.extract_strided_slice %224 {offsets = [0, 0], sizes = [8, 32], strides = [1, 1]} : vector<8x128xf32> to vector<8x32xf32>
    %226 = vector.extract_strided_slice %224 {offsets = [0, 32], sizes = [8, 32], strides = [1, 1]} : vector<8x128xf32> to vector<8x32xf32>
    %227 = vector.extract_strided_slice %224 {offsets = [0, 64], sizes = [8, 32], strides = [1, 1]} : vector<8x128xf32> to vector<8x32xf32>
    %228 = vector.extract_strided_slice %224 {offsets = [0, 96], sizes = [8, 32], strides = [1, 1]} : vector<8x128xf32> to vector<8x32xf32>
    %229 = arith.mulf %226, %195 : vector<8x32xf32>
    %230 = arith.mulf %225, %228 : vector<8x32xf32>
    %231 = arith.addf %229, %230 : vector<8x32xf32>
    %232 = math.tanh %231 : vector<8x32xf32>
    %233 = arith.mulf %227, %232 : vector<8x32xf32>
    %234 = vector.extract_strided_slice %5 {offsets = [48, 0], sizes = [8, 128], strides = [1, 1]} : vector<64x128xf32> to vector<8x128xf32>
    %cst_51 = arith.constant dense<0.000000e+00> : vector<8x128xf32>
    %235 = tpu.matmul %215, %6, %cst_51 {dimension_numbers = #tpu.dot_dimension_numbers<[1], [0], [0], [1], [0, 0, 1, 1], [], []>} : vector<8x32xf32>, vector<32x128xf32>, vector<8x128xf32> -> vector<8x128xf32>
    %236 = arith.addf %234, %235 : vector<8x128xf32>
    %237 = math.tanh %236 : vector<8x128xf32>
    %cst_52 = arith.constant 5.000000e-01 : f32
    %238 = vector.broadcast %cst_52 : f32 to vector<8x128xf32>
    %239 = arith.mulf %238, %237 : vector<8x128xf32>
    %cst_53 = arith.constant 5.000000e-01 : f32
    %240 = vector.broadcast %cst_53 : f32 to vector<8x128xf32>
    %241 = arith.addf %239, %240 : vector<8x128xf32>
    %242 = arith.select %13, %241, %237 : vector<8x128xi1>, vector<8x128xf32>
    %243 = vector.extract_strided_slice %242 {offsets = [0, 0], sizes = [8, 32], strides = [1, 1]} : vector<8x128xf32> to vector<8x32xf32>
    %244 = vector.extract_strided_slice %242 {offsets = [0, 32], sizes = [8, 32], strides = [1, 1]} : vector<8x128xf32> to vector<8x32xf32>
    %245 = vector.extract_strided_slice %242 {offsets = [0, 64], sizes = [8, 32], strides = [1, 1]} : vector<8x128xf32> to vector<8x32xf32>
    %246 = vector.extract_strided_slice %242 {offsets = [0, 96], sizes = [8, 32], strides = [1, 1]} : vector<8x128xf32> to vector<8x32xf32>
    %247 = arith.mulf %244, %213 : vector<8x32xf32>
    %248 = arith.mulf %243, %246 : vector<8x32xf32>
    %249 = arith.addf %247, %248 : vector<8x32xf32>
    %250 = math.tanh %249 : vector<8x32xf32>
    %251 = arith.mulf %245, %250 : vector<8x32xf32>
    %252 = tpu.concatenate %251, %233 in 1 : vector<8x32xf32>, vector<8x32xf32> -> vector<8x64xf32>
    %cst_54 = arith.constant dense<0.000000e+00> : vector<8x128xf32>
    %253 = tpu.matmul %252, %7, %cst_54 {dimension_numbers = #tpu.dot_dimension_numbers<[1], [0], [0], [1], [0, 0, 1, 1], [], []>} : vector<8x64xf32>, vector<64x128xf32>, vector<8x128xf32> -> vector<8x128xf32>
    %254 = arith.addf %253, %10 : vector<8x128xf32>
    %255 = math.tanh %254 : vector<8x128xf32>
    %cst_55 = arith.constant 5.000000e-01 : f32
    %256 = vector.broadcast %cst_55 : f32 to vector<8x128xf32>
    %257 = arith.mulf %256, %255 : vector<8x128xf32>
    %cst_56 = arith.constant 5.000000e-01 : f32
    %258 = vector.broadcast %cst_56 : f32 to vector<8x128xf32>
    %259 = arith.addf %257, %258 : vector<8x128xf32>
    %260 = arith.select %13, %259, %255 : vector<8x128xi1>, vector<8x128xf32>
    %261 = vector.extract_strided_slice %260 {offsets = [0, 0], sizes = [8, 32], strides = [1, 1]} : vector<8x128xf32> to vector<8x32xf32>
    %262 = vector.extract_strided_slice %260 {offsets = [0, 32], sizes = [8, 32], strides = [1, 1]} : vector<8x128xf32> to vector<8x32xf32>
    %263 = vector.extract_strided_slice %260 {offsets = [0, 64], sizes = [8, 32], strides = [1, 1]} : vector<8x128xf32> to vector<8x32xf32>
    %264 = vector.extract_strided_slice %260 {offsets = [0, 96], sizes = [8, 32], strides = [1, 1]} : vector<8x128xf32> to vector<8x32xf32>
    %265 = arith.mulf %262, %231 : vector<8x32xf32>
    %266 = arith.mulf %261, %264 : vector<8x32xf32>
    %267 = arith.addf %265, %266 : vector<8x32xf32>
    %268 = math.tanh %267 : vector<8x32xf32>
    %269 = arith.mulf %263, %268 : vector<8x32xf32>
    %270 = vector.extract_strided_slice %5 {offsets = [56, 0], sizes = [8, 128], strides = [1, 1]} : vector<64x128xf32> to vector<8x128xf32>
    %cst_57 = arith.constant dense<0.000000e+00> : vector<8x128xf32>
    %271 = tpu.matmul %251, %6, %cst_57 {dimension_numbers = #tpu.dot_dimension_numbers<[1], [0], [0], [1], [0, 0, 1, 1], [], []>} : vector<8x32xf32>, vector<32x128xf32>, vector<8x128xf32> -> vector<8x128xf32>
    %272 = arith.addf %270, %271 : vector<8x128xf32>
    %273 = math.tanh %272 : vector<8x128xf32>
    %cst_58 = arith.constant 5.000000e-01 : f32
    %274 = vector.broadcast %cst_58 : f32 to vector<8x128xf32>
    %275 = arith.mulf %274, %273 : vector<8x128xf32>
    %cst_59 = arith.constant 5.000000e-01 : f32
    %276 = vector.broadcast %cst_59 : f32 to vector<8x128xf32>
    %277 = arith.addf %275, %276 : vector<8x128xf32>
    %278 = arith.select %13, %277, %273 : vector<8x128xi1>, vector<8x128xf32>
    %279 = vector.extract_strided_slice %278 {offsets = [0, 0], sizes = [8, 32], strides = [1, 1]} : vector<8x128xf32> to vector<8x32xf32>
    %280 = vector.extract_strided_slice %278 {offsets = [0, 32], sizes = [8, 32], strides = [1, 1]} : vector<8x128xf32> to vector<8x32xf32>
    %281 = vector.extract_strided_slice %278 {offsets = [0, 64], sizes = [8, 32], strides = [1, 1]} : vector<8x128xf32> to vector<8x32xf32>
    %282 = vector.extract_strided_slice %278 {offsets = [0, 96], sizes = [8, 32], strides = [1, 1]} : vector<8x128xf32> to vector<8x32xf32>
    %283 = arith.mulf %280, %249 : vector<8x32xf32>
    %284 = arith.mulf %279, %282 : vector<8x32xf32>
    %285 = arith.addf %283, %284 : vector<8x32xf32>
    %286 = math.tanh %285 : vector<8x32xf32>
    %287 = arith.mulf %281, %286 : vector<8x32xf32>
    %288 = tpu.concatenate %287, %269 in 1 : vector<8x32xf32>, vector<8x32xf32> -> vector<8x64xf32>
    %cst_60 = arith.constant dense<0.000000e+00> : vector<8x128xf32>
    %289 = tpu.matmul %288, %7, %cst_60 {dimension_numbers = #tpu.dot_dimension_numbers<[1], [0], [0], [1], [0, 0, 1, 1], [], []>} : vector<8x64xf32>, vector<64x128xf32>, vector<8x128xf32> -> vector<8x128xf32>
    %290 = arith.addf %289, %10 : vector<8x128xf32>
    %291 = math.tanh %290 : vector<8x128xf32>
    %cst_61 = arith.constant 5.000000e-01 : f32
    %292 = vector.broadcast %cst_61 : f32 to vector<8x128xf32>
    %293 = arith.mulf %292, %291 : vector<8x128xf32>
    %cst_62 = arith.constant 5.000000e-01 : f32
    %294 = vector.broadcast %cst_62 : f32 to vector<8x128xf32>
    %295 = arith.addf %293, %294 : vector<8x128xf32>
    %296 = arith.select %13, %295, %291 : vector<8x128xi1>, vector<8x128xf32>
    %297 = vector.extract_strided_slice %296 {offsets = [0, 0], sizes = [8, 32], strides = [1, 1]} : vector<8x128xf32> to vector<8x32xf32>
    %298 = vector.extract_strided_slice %296 {offsets = [0, 32], sizes = [8, 32], strides = [1, 1]} : vector<8x128xf32> to vector<8x32xf32>
    %299 = vector.extract_strided_slice %296 {offsets = [0, 64], sizes = [8, 32], strides = [1, 1]} : vector<8x128xf32> to vector<8x32xf32>
    %300 = vector.extract_strided_slice %296 {offsets = [0, 96], sizes = [8, 32], strides = [1, 1]} : vector<8x128xf32> to vector<8x32xf32>
    %301 = arith.mulf %298, %267 : vector<8x32xf32>
    %302 = arith.mulf %297, %300 : vector<8x32xf32>
    %303 = arith.addf %301, %302 : vector<8x32xf32>
    %304 = math.tanh %303 : vector<8x32xf32>
    %305 = arith.mulf %299, %304 : vector<8x32xf32>
    %306 = tpu.concatenate %287, %305 in 0 : vector<8x32xf32>, vector<8x32xf32> -> vector<16x32xf32>
    %cst_63 = arith.constant 0.000000e+00 : f32
    %307 = vector.broadcast %cst_63 : f32 to vector<16x32xf32>
    %308 = arith.maximumf %306, %307 : vector<16x32xf32>
    %c0_64 = arith.constant 0 : index
    %c0_65 = arith.constant 0 : index
    %309 = vector.load %arg6[%c0_64, %c0_65] : memref<32x128xf32, #tpu.memory_space<vmem>>, vector<32x128xf32>
    %cst_66 = arith.constant dense<0.000000e+00> : vector<16x128xf32>
    %310 = tpu.matmul %308, %309, %cst_66 {dimension_numbers = #tpu.dot_dimension_numbers<[1], [0], [0], [1], [0, 0, 1, 1], [], []>} : vector<16x32xf32>, vector<32x128xf32>, vector<16x128xf32> -> vector<16x128xf32>
    %c0_67 = arith.constant 0 : index
    %c0_68 = arith.constant 0 : index
    %311 = vector.load %arg7[%c0_67, %c0_68] : memref<1x128xf32, #tpu.memory_space<vmem>>, vector<1x128xf32>
    %312 = vector.broadcast %311 : vector<1x128xf32> to vector<16x128xf32>
    %313 = arith.addf %310, %312 : vector<16x128xf32>
    %cst_69 = arith.constant 0.000000e+00 : f32
    %314 = vector.broadcast %cst_69 : f32 to vector<16x128xf32>
    %315 = arith.maximumf %313, %314 : vector<16x128xf32>
    %c0_70 = arith.constant 0 : index
    %c0_71 = arith.constant 0 : index
    %316 = vector.load %arg8[%c0_70, %c0_71] : memref<128x128xf32, #tpu.memory_space<vmem>>, vector<128x128xf32>
    %cst_72 = arith.constant dense<0.000000e+00> : vector<16x128xf32>
    %317 = tpu.matmul %315, %316, %cst_72 {dimension_numbers = #tpu.dot_dimension_numbers<[1], [0], [0], [1], [0, 0, 1, 1], [], []>} : vector<16x128xf32>, vector<128x128xf32>, vector<16x128xf32> -> vector<16x128xf32>
    %c0_73 = arith.constant 0 : index
    %c0_74 = arith.constant 0 : index
    %318 = vector.load %arg9[%c0_73, %c0_74] : memref<1x128xf32, #tpu.memory_space<vmem>>, vector<1x128xf32>
    %319 = vector.broadcast %318 : vector<1x128xf32> to vector<16x128xf32>
    %320 = arith.addf %317, %319 : vector<16x128xf32>
    %cst_75 = arith.constant 0.000000e+00 : f32
    %321 = vector.broadcast %cst_75 : f32 to vector<16x128xf32>
    %322 = arith.maximumf %320, %321 : vector<16x128xf32>
    %c0_76 = arith.constant 0 : index
    %c0_77 = arith.constant 0 : index
    %323 = vector.load %arg10[%c0_76, %c0_77] : memref<128x128xf32, #tpu.memory_space<vmem>>, vector<128x128xf32>
    %cst_78 = arith.constant dense<0.000000e+00> : vector<16x128xf32>
    %324 = tpu.matmul %322, %323, %cst_78 {dimension_numbers = #tpu.dot_dimension_numbers<[1], [0], [0], [1], [0, 0, 1, 1], [], []>} : vector<16x128xf32>, vector<128x128xf32>, vector<16x128xf32> -> vector<16x128xf32>
    %c0_79 = arith.constant 0 : index
    %c0_80 = arith.constant 0 : index
    %325 = vector.load %arg11[%c0_79, %c0_80] : memref<1x128xf32, #tpu.memory_space<vmem>>, vector<1x128xf32>
    %326 = vector.broadcast %325 : vector<1x128xf32> to vector<16x128xf32>
    %327 = arith.addf %324, %326 : vector<16x128xf32>
    %c0_81 = arith.constant 0 : index
    %c0_82 = arith.constant 0 : index
    %328 = vector.load %arg12[%c0_81, %c0_82] : memref<16x128xf32, #tpu.memory_space<vmem>>, vector<16x128xf32>
    tpu.vector_store %arg12[%c0_81, %c0_82], %327 {strides = array<i32>} : memref<16x128xf32, #tpu.memory_space<vmem>>, vector<16x128xf32>,
    return
  }
}

</mosaic_0001>

<llo_original>
// kernel: tpu_custom_call.1
$region0: #{tpu_custom_call.1}
  #allocation0 [shape = 'u32[]', space=smem, size = 0x4, offset = 0x4, fixed_abs, tag = 'smem constant byte address 0x4 - core index']
  #allocation1 [shape = 'u32[144,128]{1,0:T(1,128)}', space=vmem, size = 0x12000, scoped, tag = 'internal scratch']
  %s0 = inlined_call_operand.vmem [shape: f32[64,16], index: 0, kind: input, shape index: {}]
  %s1 = inlined_call_operand.hbm [shape: f32[16,128], index: 1, kind: input, shape index: {}]
  %s2 = inlined_call_operand.hbm [shape: f32[32,128], index: 2, kind: input, shape index: {}]
  %s3 = inlined_call_operand.vmem [shape: f32[1,128], index: 3, kind: input, shape index: {}]
  %s4 = inlined_call_operand.vmem [shape: f32[64,128], index: 4, kind: input, shape index: {}]
  %s5 = inlined_call_operand.vmem [shape: f32[1,128], index: 5, kind: input, shape index: {}]
  %s6 = inlined_call_operand.vmem [shape: f32[32,128], index: 6, kind: input, shape index: {}]
  %s7 = inlined_call_operand.vmem [shape: f32[1,128], index: 7, kind: input, shape index: {}]
  %s8 = inlined_call_operand.hbm [shape: f32[128,128], index: 8, kind: input, shape index: {}]
  %s9 = inlined_call_operand.vmem [shape: f32[1,128], index: 9, kind: input, shape index: {}]
  %s10 = inlined_call_operand.hbm [shape: f32[128,128], index: 10, kind: input, shape index: {}]
  %s11 = inlined_call_operand.vmem [shape: f32[1,128], index: 11, kind: input, shape index: {}]
  %s12 = inlined_call_operand.hbm [shape: f32[16,128], index: 12, kind: output, shape index: {}]
  %s13 = sld [smem:[#allocation0]]
  $region74: #{tpu_custom_call.1} parent=0
    _
  %s15 = ssub.s32 1, %s13
  %s16 = scalar_select 0, %s15, %s13
  $region1: #{tpu_custom_call.1} parent=0
    #allocation2 [shape = 'u8[8192]{0}', space=vmem, size = 0x2000, scoped, tag = 'input window, operand 1, single buffered']
    #allocation3 [shape = 's32[1]{0}', space=sflag, size = 0x4, scoped, tag = 'scoped memory for tpu_custom_call.1']
    #allocation4 [shape = 's32[1]{0}', space=sflag, size = 0x4, scoped, tag = 'scoped memory for tpu_custom_call.1']
    #allocation5 [shape = 'u8[16384]{0}', space=vmem, size = 0x4000, scoped, tag = 'input window, operand 2, single buffered']
    #allocation6 [shape = 's32[1]{0}', space=sflag, size = 0x4, scoped, tag = 'scoped memory for tpu_custom_call.1']
    #allocation7 [shape = 'u8[65536]{0}', space=vmem, size = 0x10000, scoped, tag = 'input window, operand 8, single buffered']
    #allocation8 [shape = 'u8[65536]{0}', space=vmem, size = 0x10000, scoped, tag = 'input window, operand 10, single buffered']
    #allocation9 [shape = 's32[1]{0}', space=sflag, size = 0x4, scoped, tag = 'scoped memory for tpu_custom_call.1']
    #allocation10 [shape = 'u8[8192]{0}', space=vmem, size = 0x2000, scoped, tag = 'output window, operand 0, single buffered']
    %17 = vsyncpa [#allocation3], 0
    %18 = vsyncpa [#allocation6], 0
    %19 = vsyncpa [#allocation9], 0
    %20 = vsyncpa [#allocation4], 0
    // Predicated region
    $region2: #{tpu_custom_call.1} parent=1 // pred_check
      _
    $region3: #{tpu_custom_call.1} parent=1 // pred_check_branch
      %22 = sbr.rel (0) target = $region5
    $region4: #{tpu_custom_call.1} parent=1 // pred_region
      _
    $region5: #{tpu_custom_call.1} parent=1 // pred_fallthru
      _
    // Predicated region
    $region6: #{tpu_custom_call.1} parent=1 // pred_check
      _
    $region7: #{tpu_custom_call.1} parent=1 // pred_check_branch
      %24 = sbr.rel (0) target = $region9
    $region8: #{tpu_custom_call.1} parent=1 // pred_region
      %s26 = ssub.s32 256, 256
      %27 = vsyncadd [#allocation3], %s26
      %s28 = sshll.u32 [#allocation2], 4
      %s29 = int_to_ptr.vmem [resolvable:$true] %s28
      %34 = dma.hbm_to_vmem [thread:$0]  %s1, 256, %s29, [#allocation3], 128, 128, 8
    $region9: #{tpu_custom_call.1} parent=1 // pred_fallthru
      _
    // Predicated region
    $region10: #{tpu_custom_call.1} parent=1 // pred_check
      _
    $region11: #{tpu_custom_call.1} parent=1 // pred_check_branch
      %36 = sbr.rel (0) target = $region13
    $region12: #{tpu_custom_call.1} parent=1 // pred_region
      %s38 = ssub.s32 512, 512
      %39 = vsyncadd [#allocation6], %s38
      %s40 = sshll.u32 [#allocation5], 4
      %s41 = int_to_ptr.vmem [resolvable:$true] %s40
      %46 = dma.hbm_to_vmem [thread:$0]  %s2, 512, %s41, [#allocation6], 128, 128, 8
    $region13: #{tpu_custom_call.1} parent=1 // pred_fallthru
      _
    // Predicated region
    $region14: #{tpu_custom_call.1} parent=1 // pred_check
      _
    $region15: #{tpu_custom_call.1} parent=1 // pred_check_branch
      %48 = sbr.rel (0) target = $region17
    $region16: #{tpu_custom_call.1} parent=1 // pred_region
      _
    $region17: #{tpu_custom_call.1} parent=1 // pred_fallthru
      _
    // Predicated region
    $region18: #{tpu_custom_call.1} parent=1 // pred_check
      _
    $region19: #{tpu_custom_call.1} parent=1 // pred_check_branch
      %50 = sbr.rel (0) target = $region21
    $region20: #{tpu_custom_call.1} parent=1 // pred_region
      _
    $region21: #{tpu_custom_call.1} parent=1 // pred_fallthru
      _
    // Predicated region
    $region22: #{tpu_custom_call.1} parent=1 // pred_check
      _
    $region23: #{tpu_custom_call.1} parent=1 // pred_check_branch
      %52 = sbr.rel (0) target = $region25
    $region24: #{tpu_custom_call.1} parent=1 // pred_region
      _
    $region25: #{tpu_custom_call.1} parent=1 // pred_fallthru
      _
    // Predicated region
    $region26: #{tpu_custom_call.1} parent=1 // pred_check
      _
    $region27: #{tpu_custom_call.1} parent=1 // pred_check_branch
      %54 = sbr.rel (0) target = $region29
    $region28: #{tpu_custom_call.1} parent=1 // pred_region
      _
    $region29: #{tpu_custom_call.1} parent=1 // pred_fallthru
      _
    // Predicated region
    $region30: #{tpu_custom_call.1} parent=1 // pred_check
      _
    $region31: #{tpu_custom_call.1} parent=1 // pred_check_branch
      %56 = sbr.rel (0) target = $region33
    $region32: #{tpu_custom_call.1} parent=1 // pred_region
      _
    $region33: #{tpu_custom_call.1} parent=1 // pred_fallthru
      _
    // Predicated region
    $region34: #{tpu_custom_call.1} parent=1 // pred_check
      _
    $region35: #{tpu_custom_call.1} parent=1 // pred_check_branch
      %58 = sbr.rel (0) target = $region37
    $region36: #{tpu_custom_call.1} parent=1 // pred_region
      %s60 = ssub.s32 2048, 2048
      %61 = vsyncadd [#allocation6], %s60
      %s62 = sshll.u32 [#allocation7], 4
      %s63 = int_to_ptr.vmem [resolvable:$true] %s62
      %68 = dma.hbm_to_vmem [thread:$0]  %s8, 2048, %s63, [#allocation6], 128, 128, 8
    $region37: #{tpu_custom_call.1} parent=1 // pred_fallthru
      _
    // Predicated region
    $region38: #{tpu_custom_call.1} parent=1 // pred_check
      _
    $region39: #{tpu_custom_call.1} parent=1 // pred_check_branch
      %70 = sbr.rel (0) target = $region41
    $region40: #{tpu_custom_call.1} parent=1 // pred_region
      _
    $region41: #{tpu_custom_call.1} parent=1 // pred_fallthru
      _
    // Predicated region
    $region42: #{tpu_custom_call.1} parent=1 // pred_check
      _
    $region43: #{tpu_custom_call.1} parent=1 // pred_check_branch
      %72 = sbr.rel (0) target = $region45
    $region44: #{tpu_custom_call.1} parent=1 // pred_region
      %s74 = ssub.s32 2048, 2048
      %75 = vsyncadd [#allocation9], %s74
      %s76 = sshll.u32 [#allocation8], 4
      %s77 = int_to_ptr.vmem [resolvable:$true] %s76
      %82 = dma.hbm_to_vmem [thread:$0]  %s10, 2048, %s77, [#allocation9], 128, 128, 8
    $region45: #{tpu_custom_call.1} parent=1 // pred_fallthru
      _
    // Predicated region
    $region46: #{tpu_custom_call.1} parent=1 // pred_check
      _
    $region47: #{tpu_custom_call.1} parent=1 // pred_check_branch
      %84 = sbr.rel (0) target = $region49
    $region48: #{tpu_custom_call.1} parent=1 // pred_region
      _
    $region49: #{tpu_custom_call.1} parent=1 // pred_fallthru
      _
    // Predicated region
    $region50: #{tpu_custom_call.1} parent=1 // pred_check
      _
    $region51: #{tpu_custom_call.1} parent=1 // pred_check_branch
      %86 = sbr.rel (0) target = $region53
    $region52: #{tpu_custom_call.1} parent=1 // pred_region
      %87 = dma.done [#allocation3], 256
    $region53: #{tpu_custom_call.1} parent=1 // pred_fallthru
      _
    // Predicated region
    $region54: #{tpu_custom_call.1} parent=1 // pred_check
      _
    $region55: #{tpu_custom_call.1} parent=1 // pred_check_branch
      %89 = sbr.rel (0) target = $region57
    $region56: #{tpu_custom_call.1} parent=1 // pred_region
      %90 = dma.done [#allocation6], 512
    $region57: #{tpu_custom_call.1} parent=1 // pred_fallthru
      _
    // Predicated region
    $region58: #{tpu_custom_call.1} parent=1 // pred_check
      _
    $region59: #{tpu_custom_call.1} parent=1 // pred_check_branch
      %92 = sbr.rel (0) target = $region61
    $region60: #{tpu_custom_call.1} parent=1 // pred_region
      %93 = dma.done [#allocation6], 2048
    $region61: #{tpu_custom_call.1} parent=1 // pred_fallthru
      _
    // Predicated region
    $region62: #{tpu_custom_call.1} parent=1 // pred_check
      _
    $region63: #{tpu_custom_call.1} parent=1 // pred_check_branch
      %95 = sbr.rel (0) target = $region65
    $region64: #{tpu_custom_call.1} parent=1 // pred_region
      %96 = dma.done [#allocation9], 2048
    $region65: #{tpu_custom_call.1} parent=1 // pred_fallthru
      _
    %v97 = vld [vmem:[%s0] sm:$0xff]
    %v98 = vld [vmem:[%s0 + $0x8] sm:$0xff]
    %v99 = vld [vmem:[%s0 + $0x10] sm:$0xff]
    %v100 = vld [vmem:[%s0 + $0x18] sm:$0xff]
    %v101 = vld [vmem:[%s0 + $0x20] sm:$0xff]
    %v102 = vld [vmem:[%s0 + $0x28] sm:$0xff]
    %v103 = vld [vmem:[%s0 + $0x30] sm:$0xff]
    %v104 = vld [vmem:[%s0 + $0x38] sm:$0xff]
    %v105 = vld [vmem:[#allocation2] sm:$0xff]
    %v106 = vld [vmem:[#allocation2 + $0x8] sm:$0xff]
    %v107 = vld [vmem:[%s3] sm:$0x1]
    %v109 = vlaneseq
    %v110 = vshrl.u32 %v109, 7
    %v111 = vsub.s32 0, %v110
    %v112 = vrot.slane %v107, %v111
    %vm114 = vcmask 130048
    %v116 = vsel %vm114, %v97, 0
    %v119 = vsel %vm114, %v98, 0
    %v122 = vsel %vm114, %v99, 0
    %v125 = vsel %vm114, %v100, 0
    %v128 = vsel %vm114, %v101, 0
    %v131 = vsel %vm114, %v102, 0
    %v134 = vsel %vm114, %v103, 0
    %v137 = vsel %vm114, %v104, 0
    %139 = vmatprep.subr.mxu0 0.0
    %140 = vmatpush1.msra.mxu0 %v105
    %141 = vmatprep.subr.mxu0 0.0
    %142 = vmatpush1.msra.mxu0 %v106
    %143 = vmatprep.subr.mxu0 0.0
    %144 = vmatpush1.msra.mxu0 0.0
    %145 = vmatprep.subr.mxu0 0.0
    %146 = vmatpush1.msra.mxu0 0.0
    %147 = vmatprep.subr.mxu0 0.0
    %148 = vmatpush1.msra.mxu0 0.0
    %149 = vmatprep.subr.mxu0 0.0
    %150 = vmatpush1.msra.mxu0 0.0
    %151 = vmatprep.subr.mxu0 0.0
    %152 = vmatpush1.msra.mxu0 0.0
    %153 = vmatprep.subr.mxu0 0.0
    %154 = vmatpush1.msra.mxu0 0.0
    %155 = vmatprep.subr.mxu0 0.0
    %156 = vmatpush1.msra.mxu0 0.0
    %157 = vmatprep.subr.mxu0 0.0
    %158 = vmatpush1.msra.mxu0 0.0
    %159 = vmatprep.subr.mxu0 0.0
    %160 = vmatpush1.msra.mxu0 0.0
    %161 = vmatprep.subr.mxu0 0.0
    %162 = vmatpush1.msra.mxu0 0.0
    %163 = vmatprep.subr.mxu0 0.0
    %164 = vmatpush1.msra.mxu0 0.0
    %165 = vmatprep.subr.mxu0 0.0
    %166 = vmatpush1.msra.mxu0 0.0
    %167 = vmatprep.subr.mxu0 0.0
    %168 = vmatpush1.msra.mxu0 0.0
    %169 = vmatprep.subr.mxu0 0.0
    %170 = vmatpush1.msra.mxu0 0.0
    %171 = vmatprep.subr.mxu0 0.0
    %172 = vmatpush1.msra.mxu0 0.0
    %173 = vmatprep.subr.mxu0 0.0
    %174 = vmatpush1.msra.mxu0 0.0
    %175 = vmatprep.subr.mxu0 0.0
    %176 = vmatpush1.msra.mxu0 0.0
    %177 = vmatprep.subr.mxu0 0.0
    %178 = vmatpush1.msra.mxu0 0.0
    %179 = vmatprep.subr.mxu0 0.0
    %180 = vmatpush1.msra.mxu0 0.0
    %181 = vmatprep.subr.mxu0 0.0
    %182 = vmatpush1.msra.mxu0 0.0
    %183 = vmatprep.subr.mxu0 0.0
    %184 = vmatpush1.msra.mxu0 0.0
    %185 = vmatprep.subr.mxu0 0.0
    %186 = vmatpush1.msra.mxu0 0.0
    %187 = vmatprep.subr.mxu0 0.0
    %188 = vmatpush1.msra.mxu0 0.0
    %189 = vmatprep.subr.mxu0 0.0
    %190 = vmatpush1.msra.mxu0 0.0
    %191 = vmatprep.subr.mxu0 0.0
    %192 = vmatpush1.msra.mxu0 0.0
    %193 = vmatprep.subr.mxu0 0.0
    %194 = vmatpush1.msra.mxu0 0.0
    %195 = vmatprep.subr.mxu0 0.0
    %196 = vmatpush1.msra.mxu0 0.0
    %197 = vmatprep.subr.mxu0 0.0
    %198 = vmatpush1.msra.mxu0 0.0
    %199 = vmatprep.subr.mxu0 0.0
    %200 = vmatpush1.msra.mxu0 0.0
    %201 = vmatprep.subr.mxu0 0.0
    %202 = vmatpush1.msra.mxu0 0.0
    %203 = vmatprep.mubr.f32.mxu0 0.0
    %204 = vmatmul.mubr.f32.gmra.mrb[0].mxu0 %v116
    %v205 = vpop.f32.mrb[0].mxu0
    %v206 = vadd.f32 %v112, %v205
    %v207 = vpop.f32.mrb[0].mxu0
    %208 = vmatprep.mubr.f32.mxu0 0.0
    %209 = vmatmul.mubr.f32.gmra.mrb[0].mxu0 %v119
    %v210 = vpop.f32.mrb[0].mxu0
    %v211 = vadd.f32 %v112, %v210
    %v212 = vpop.f32.mrb[0].mxu0
    %213 = vmatprep.mubr.f32.mxu0 0.0
    %214 = vmatmul.mubr.f32.gmra.mrb[0].mxu0 %v122
    %v215 = vpop.f32.mrb[0].mxu0
    %v216 = vadd.f32 %v112, %v215
    %v217 = vpop.f32.mrb[0].mxu0
    %218 = vmatprep.mubr.f32.mxu0 0.0
    %219 = vmatmul.mubr.f32.gmra.mrb[0].mxu0 %v125
    %v220 = vpop.f32.mrb[0].mxu0
    %v221 = vadd.f32 %v112, %v220
    %v222 = vpop.f32.mrb[0].mxu0
    %223 = vmatprep.mubr.f32.mxu0 0.0
    %224 = vmatmul.mubr.f32.gmra.mrb[0].mxu0 %v128
    %v225 = vpop.f32.mrb[0].mxu0
    %v226 = vadd.f32 %v112, %v225
    %v227 = vpop.f32.mrb[0].mxu0
    %228 = vmatprep.mubr.f32.mxu0 0.0
    %229 = vmatmul.mubr.f32.gmra.mrb[0].mxu0 %v131
    %v230 = vpop.f32.mrb[0].mxu0
    %v231 = vadd.f32 %v112, %v230
    %v232 = vpop.f32.mrb[0].mxu0
    %233 = vmatprep.mubr.f32.mxu0 0.0
    %234 = vmatmul.mubr.f32.gmra.mrb[0].mxu0 %v134
    %v235 = vpop.f32.mrb[0].mxu0
    %v236 = vadd.f32 %v112, %v235
    %v237 = vpop.f32.mrb[0].mxu0
    %238 = vmatprep.mubr.f32.mxu0 0.0
    %239 = vmatmul.mubr.f32.gmra.mrb[0].mxu0 %v137
    %v240 = vpop.f32.mrb[0].mxu0
    %v241 = vadd.f32 %v112, %v240
    %v242 = vpop.f32.mrb[0].mxu0
    %243 = vdwg.mxu0
    %v244 = vld [vmem:[#allocation5] sm:$0xff]
    %v245 = vld [vmem:[#allocation5 + $0x8] sm:$0xff]
    %v246 = vld [vmem:[#allocation5 + $0x10] sm:$0xff]
    %v247 = vld [vmem:[#allocation5 + $0x18] sm:$0xff]
    %v248 = vld [vmem:[%s4] sm:$0xff]
    %v249 = vld [vmem:[%s4 + $0x8] sm:$0xff]
    %v250 = vld [vmem:[%s4 + $0x10] sm:$0xff]
    %v251 = vld [vmem:[%s4 + $0x18] sm:$0xff]
    %v252 = vld [vmem:[%s4 + $0x20] sm:$0xff]
    %v253 = vld [vmem:[%s4 + $0x28] sm:$0xff]
    %v254 = vld [vmem:[%s4 + $0x30] sm:$0xff]
    %v255 = vld [vmem:[%s4 + $0x38] sm:$0xff]
    %v256 = vld [vmem:[%s5] sm:$0x1]
    %v258 = vlaneseq
    %v259 = vshrl.u32 %v258, 7
    %v260 = vsub.s32 0, %v259
    %v261 = vrot.slane %v256, %v260
    %v263 = vlaneseq
    %v264 = vand.u32 %v263, 127
    %vm265 = vcmp.lt.s32.totalorder %v264, 96
    %vm266 = vcmask 261120
    %v268 = vsel %vm266, 0.0, 0
    %270 = vmatprep.subr.mxu0 0.0
    %271 = vmatpush1.msra.mxu0 %v244
    %272 = vmatprep.subr.mxu0 0.0
    %273 = vmatpush1.msra.mxu0 %v245
    %274 = vmatprep.subr.mxu0 0.0
    %275 = vmatpush1.msra.mxu0 %v246
    %276 = vmatprep.subr.mxu0 0.0
    %277 = vmatpush1.msra.mxu0 %v247
    %278 = vmatprep.subr.mxu0 0.0
    %279 = vmatpush1.msra.mxu0 0.0
    %280 = vmatprep.subr.mxu0 0.0
    %281 = vmatpush1.msra.mxu0 0.0
    %282 = vmatprep.subr.mxu0 0.0
    %283 = vmatpush1.msra.mxu0 0.0
    %284 = vmatprep.subr.mxu0 0.0
    %285 = vmatpush1.msra.mxu0 0.0
    %286 = vmatprep.subr.mxu0 0.0
    %287 = vmatpush1.msra.mxu0 0.0
    %288 = vmatprep.subr.mxu0 0.0
    %289 = vmatpush1.msra.mxu0 0.0
    %290 = vmatprep.subr.mxu0 0.0
    %291 = vmatpush1.msra.mxu0 0.0
    %292 = vmatprep.subr.mxu0 0.0
    %293 = vmatpush1.msra.mxu0 0.0
    %294 = vmatprep.subr.mxu0 0.0
    %295 = vmatpush1.msra.mxu0 0.0
    %296 = vmatprep.subr.mxu0 0.0
    %297 = vmatpush1.msra.mxu0 0.0
    %298 = vmatprep.subr.mxu0 0.0
    %299 = vmatpush1.msra.mxu0 0.0
    %300 = vmatprep.subr.mxu0 0.0
    %301 = vmatpush1.msra.mxu0 0.0
    %302 = vmatprep.subr.mxu0 0.0
    %303 = vmatpush1.msra.mxu0 0.0
    %304 = vmatprep.subr.mxu0 0.0
    %305 = vmatpush1.msra.mxu0 0.0
    %306 = vmatprep.subr.mxu0 0.0
    %307 = vmatpush1.msra.mxu0 0.0
    %308 = vmatprep.subr.mxu0 0.0
    %309 = vmatpush1.msra.mxu0 0.0
    %310 = vmatprep.subr.mxu0 0.0
    %311 = vmatpush1.msra.mxu0 0.0
    %312 = vmatprep.subr.mxu0 0.0
    %313 = vmatpush1.msra.mxu0 0.0
    %314 = vmatprep.subr.mxu0 0.0
    %315 = vmatpush1.msra.mxu0 0.0
    %316 = vmatprep.subr.mxu0 0.0
    %317 = vmatpush1.msra.mxu0 0.0
    %318 = vmatprep.subr.mxu0 0.0
    %319 = vmatpush1.msra.mxu0 0.0
    %320 = vmatprep.subr.mxu0 0.0
    %321 = vmatpush1.msra.mxu0 0.0
    %322 = vmatprep.subr.mxu0 0.0
    %323 = vmatpush1.msra.mxu0 0.0
    %324 = vmatprep.subr.mxu0 0.0
    %325 = vmatpush1.msra.mxu0 0.0
    %326 = vmatprep.subr.mxu0 0.0
    %327 = vmatpush1.msra.mxu0 0.0
    %328 = vmatprep.subr.mxu0 0.0
    %329 = vmatpush1.msra.mxu0 0.0
    %330 = vmatprep.subr.mxu0 0.0
    %331 = vmatpush1.msra.mxu0 0.0
    %332 = vmatprep.subr.mxu0 0.0
    %333 = vmatpush1.msra.mxu0 0.0
    %334 = vmatprep.mubr.f32.mxu0 0.0
    %335 = vmatmul.mubr.f32.gmra.mrb[0].mxu0 %v268
    %v336 = vpop.f32.mrb[0].mxu0
    %v337 = vadd.f32 0.0, %v336
    %v338 = vpop.f32.mrb[0].mxu0
    %339 = vdwg.mxu0
    %v340 = vadd.f32 %v206, %v337
    %v341 = vtanh.pop %v340
    %v342 = vmul.f32 %v341, 0.5
    %v343 = vadd.f32 %v342, 0.5
    %v344 = vsel %vm265, %v343, %v341
    %v345 = vmul.f32 %v344, 0.0
    %347 = vrot.lane.b32.xlu0 %v344, 32
    %v348 = vpop.permute.xlu0 %347
    %v350 = vmul.f32 %v344, %v348
    %352 = vrot.lane.b32.xlu0 %v350, 32
    %v353 = vpop.permute.xlu0 %352
    %v355 = vadd.f32 %v345, %v353
    %v356 = vtanh.pop %v355
    %358 = vrot.lane.b32.xlu0 %v356, 32
    %v359 = vpop.permute.xlu0 %358
    %v361 = vmul.f32 %v344, %v359
    %363 = vrot.lane.b32.xlu0 %v361, 64
    %v364 = vpop.permute.xlu0 %363
    %v366 = vsel %vm266, %v364, 0.0
    %vm367 = vcmask 523264
    %v369 = vsel %vm367, %v366, 0
    %371 = vmatprep.subr.mxu0 0.0
    %372 = vmatpush1.msra.mxu0 %v248
    %373 = vmatprep.subr.mxu0 0.0
    %374 = vmatpush1.msra.mxu0 %v249
    %375 = vmatprep.subr.mxu0 0.0
    %376 = vmatpush1.msra.mxu0 %v250
    %377 = vmatprep.subr.mxu0 0.0
    %378 = vmatpush1.msra.mxu0 %v251
    %379 = vmatprep.subr.mxu0 0.0
    %380 = vmatpush1.msra.mxu0 %v252
    %381 = vmatprep.subr.mxu0 0.0
    %382 = vmatpush1.msra.mxu0 %v253
    %383 = vmatprep.subr.mxu0 0.0
    %384 = vmatpush1.msra.mxu0 %v254
    %385 = vmatprep.subr.mxu0 0.0
    %386 = vmatpush1.msra.mxu0 %v255
    %387 = vmatprep.subr.mxu0 0.0
    %388 = vmatpush1.msra.mxu0 0.0
    %389 = vmatprep.subr.mxu0 0.0
    %390 = vmatpush1.msra.mxu0 0.0
    %391 = vmatprep.subr.mxu0 0.0
    %392 = vmatpush1.msra.mxu0 0.0
    %393 = vmatprep.subr.mxu0 0.0
    %394 = vmatpush1.msra.mxu0 0.0
    %395 = vmatprep.subr.mxu0 0.0
    %396 = vmatpush1.msra.mxu0 0.0
    %397 = vmatprep.subr.mxu0 0.0
    %398 = vmatpush1.msra.mxu0 0.0
    %399 = vmatprep.subr.mxu0 0.0
    %400 = vmatpush1.msra.mxu0 0.0
    %401 = vmatprep.subr.mxu0 0.0
    %402 = vmatpush1.msra.mxu0 0.0
    %403 = vmatprep.subr.mxu0 0.0
    %404 = vmatpush1.msra.mxu0 0.0
    %405 = vmatprep.subr.mxu0 0.0
    %406 = vmatpush1.msra.mxu0 0.0
    %407 = vmatprep.subr.mxu0 0.0
    %408 = vmatpush1.msra.mxu0 0.0
    %409 = vmatprep.subr.mxu0 0.0
    %410 = vmatpush1.msra.mxu0 0.0
    %411 = vmatprep.subr.mxu0 0.0
    %412 = vmatpush1.msra.mxu0 0.0
    %413 = vmatprep.subr.mxu0 0.0
    %414 = vmatpush1.msra.mxu0 0.0
    %415 = vmatprep.subr.mxu0 0.0
    %416 = vmatpush1.msra.mxu0 0.0
    %417 = vmatprep.subr.mxu0 0.0
    %418 = vmatpush1.msra.mxu0 0.0
    %419 = vmatprep.subr.mxu0 0.0
    %420 = vmatpush1.msra.mxu0 0.0
    %421 = vmatprep.subr.mxu0 0.0
    %422 = vmatpush1.msra.mxu0 0.0
    %423 = vmatprep.subr.mxu0 0.0
    %424 = vmatpush1.msra.mxu0 0.0
    %425 = vmatprep.subr.mxu0 0.0
    %426 = vmatpush1.msra.mxu0 0.0
    %427 = vmatprep.subr.mxu0 0.0
    %428 = vmatpush1.msra.mxu0 0.0
    %429 = vmatprep.subr.mxu0 0.0
    %430 = vmatpush1.msra.mxu0 0.0
    %431 = vmatprep.subr.mxu0 0.0
    %432 = vmatpush1.msra.mxu0 0.0
    %433 = vmatprep.subr.mxu0 0.0
    %434 = vmatpush1.msra.mxu0 0.0
    %435 = vmatprep.mubr.f32.mxu0 0.0
    %436 = vmatmul.mubr.f32.gmra.mrb[0].mxu0 %v369
    %v437 = vpop.f32.mrb[0].mxu0
    %v438 = vadd.f32 %v261, %v437
    %v439 = vpop.f32.mrb[0].mxu0
    %440 = vdwg.mxu0
    %v441 = vtanh.pop %v438
    %v442 = vmul.f32 %v441, 0.5
    %v443 = vadd.f32 %v442, 0.5
    %v444 = vsel %vm265, %v443, %v441
    %v445 = vmul.f32 %v444, 0.0
    %447 = vrot.lane.b32.xlu0 %v444, 32
    %v448 = vpop.permute.xlu0 %447
    %v450 = vmul.f32 %v444, %v448
    %452 = vrot.lane.b32.xlu0 %v450, 32
    %v453 = vpop.permute.xlu0 %452
    %v455 = vadd.f32 %v445, %v453
    %v456 = vtanh.pop %v455
    %458 = vrot.lane.b32.xlu0 %v456, 32
    %v459 = vpop.permute.xlu0 %458
    %v461 = vmul.f32 %v444, %v459
    %v462 = vsel %vm266, %v364, 0
    %464 = vmatprep.subr.mxu0 0.0
    %465 = vmatpush1.msra.mxu0 %v244
    %466 = vmatprep.subr.mxu0 0.0
    %467 = vmatpush1.msra.mxu0 %v245
    %468 = vmatprep.subr.mxu0 0.0
    %469 = vmatpush1.msra.mxu0 %v246
    %470 = vmatprep.subr.mxu0 0.0
    %471 = vmatpush1.msra.mxu0 %v247
    %472 = vmatprep.subr.mxu0 0.0
    %473 = vmatpush1.msra.mxu0 0.0
    %474 = vmatprep.subr.mxu0 0.0
    %475 = vmatpush1.msra.mxu0 0.0
    %476 = vmatprep.subr.mxu0 0.0
    %477 = vmatpush1.msra.mxu0 0.0
    %478 = vmatprep.subr.mxu0 0.0
    %479 = vmatpush1.msra.mxu0 0.0
    %480 = vmatprep.subr.mxu0 0.0
    %481 = vmatpush1.msra.mxu0 0.0
    %482 = vmatprep.subr.mxu0 0.0
    %483 = vmatpush1.msra.mxu0 0.0
    %484 = vmatprep.subr.mxu0 0.0
    %485 = vmatpush1.msra.mxu0 0.0
    %486 = vmatprep.subr.mxu0 0.0
    %487 = vmatpush1.msra.mxu0 0.0
    %488 = vmatprep.subr.mxu0 0.0
    %489 = vmatpush1.msra.mxu0 0.0
    %490 = vmatprep.subr.mxu0 0.0
    %491 = vmatpush1.msra.mxu0 0.0
    %492 = vmatprep.subr.mxu0 0.0
    %493 = vmatpush1.msra.mxu0 0.0
    %494 = vmatprep.subr.mxu0 0.0
    %495 = vmatpush1.msra.mxu0 0.0
    %496 = vmatprep.subr.mxu0 0.0
    %497 = vmatpush1.msra.mxu0 0.0
    %498 = vmatprep.subr.mxu0 0.0
    %499 = vmatpush1.msra.mxu0 0.0
    %500 = vmatprep.subr.mxu0 0.0
    %501 = vmatpush1.msra.mxu0 0.0
    %502 = vmatprep.subr.mxu0 0.0
    %503 = vmatpush1.msra.mxu0 0.0
    %504 = vmatprep.subr.mxu0 0.0
    %505 = vmatpush1.msra.mxu0 0.0
    %506 = vmatprep.subr.mxu0 0.0
    %507 = vmatpush1.msra.mxu0 0.0
    %508 = vmatprep.subr.mxu0 0.0
    %509 = vmatpush1.msra.mxu0 0.0
    %510 = vmatprep.subr.mxu0 0.0
    %511 = vmatpush1.msra.mxu0 0.0
    %512 = vmatprep.subr.mxu0 0.0
    %513 = vmatpush1.msra.mxu0 0.0
    %514 = vmatprep.subr.mxu0 0.0
    %515 = vmatpush1.msra.mxu0 0.0
    %516 = vmatprep.subr.mxu0 0.0
    %517 = vmatpush1.msra.mxu0 0.0
    %518 = vmatprep.subr.mxu0 0.0
    %519 = vmatpush1.msra.mxu0 0.0
    %520 = vmatprep.subr.mxu0 0.0
    %521 = vmatpush1.msra.mxu0 0.0
    %522 = vmatprep.subr.mxu0 0.0
    %523 = vmatpush1.msra.mxu0 0.0
    %524 = vmatprep.subr.mxu0 0.0
    %525 = vmatpush1.msra.mxu0 0.0
    %526 = vmatprep.subr.mxu0 0.0
    %527 = vmatpush1.msra.mxu0 0.0
    %528 = vmatprep.mubr.f32.mxu0 0.0
    %529 = vmatmul.mubr.f32.gmra.mrb[0].mxu0 %v462
    %v530 = vpop.f32.mrb[0].mxu0
    %v531 = vadd.f32 0.0, %v530
    %v532 = vpop.f32.mrb[0].mxu0
    %533 = vdwg.mxu0
    %v534 = vadd.f32 %v211, %v531
    %v535 = vtanh.pop %v534
    %v536 = vmul.f32 %v535, 0.5
    %v537 = vadd.f32 %v536, 0.5
    %v538 = vsel %vm265, %v537, %v535
    %v539 = vmul.f32 %v538, %v355
    %541 = vrot.lane.b32.xlu0 %v538, 32
    %v542 = vpop.permute.xlu0 %541
    %v544 = vmul.f32 %v538, %v542
    %546 = vrot.lane.b32.xlu0 %v544, 32
    %v547 = vpop.permute.xlu0 %546
    %v549 = vadd.f32 %v539, %v547
    %v550 = vtanh.pop %v549
    %552 = vrot.lane.b32.xlu0 %v550, 32
    %v553 = vpop.permute.xlu0 %552
    %v555 = vmul.f32 %v538, %v553
    %557 = vrot.lane.b32.xlu0 %v555, 64
    %v558 = vpop.permute.xlu0 %557
    %561 = vrot.lane.b32.xlu0 %v461, 96
    %v562 = vpop.permute.xlu0 %561
    %v564 = vsel %vm266, %v558, %v562
    %v566 = vsel %vm367, %v564, 0
    %568 = vmatprep.subr.mxu0 0.0
    %569 = vmatpush1.msra.mxu0 %v248
    %570 = vmatprep.subr.mxu0 0.0
    %571 = vmatpush1.msra.mxu0 %v249
    %572 = vmatprep.subr.mxu0 0.0
    %573 = vmatpush1.msra.mxu0 %v250
    %574 = vmatprep.subr.mxu0 0.0
    %575 = vmatpush1.msra.mxu0 %v251
    %576 = vmatprep.subr.mxu0 0.0
    %577 = vmatpush1.msra.mxu0 %v252
    %578 = vmatprep.subr.mxu0 0.0
    %579 = vmatpush1.msra.mxu0 %v253
    %580 = vmatprep.subr.mxu0 0.0
    %581 = vmatpush1.msra.mxu0 %v254
    %582 = vmatprep.subr.mxu0 0.0
    %583 = vmatpush1.msra.mxu0 %v255
    %584 = vmatprep.subr.mxu0 0.0
    %585 = vmatpush1.msra.mxu0 0.0
    %586 = vmatprep.subr.mxu0 0.0
    %587 = vmatpush1.msra.mxu0 0.0
    %588 = vmatprep.subr.mxu0 0.0
    %589 = vmatpush1.msra.mxu0 0.0
    %590 = vmatprep.subr.mxu0 0.0
    %591 = vmatpush1.msra.mxu0 0.0
    %592 = vmatprep.subr.mxu0 0.0
    %593 = vmatpush1.msra.mxu0 0.0
    %594 = vmatprep.subr.mxu0 0.0
    %595 = vmatpush1.msra.mxu0 0.0
    %596 = vmatprep.subr.mxu0 0.0
    %597 = vmatpush1.msra.mxu0 0.0
    %598 = vmatprep.subr.mxu0 0.0
    %599 = vmatpush1.msra.mxu0 0.0
    %600 = vmatprep.subr.mxu0 0.0
    %601 = vmatpush1.msra.mxu0 0.0
    %602 = vmatprep.subr.mxu0 0.0
    %603 = vmatpush1.msra.mxu0 0.0
    %604 = vmatprep.subr.mxu0 0.0
    %605 = vmatpush1.msra.mxu0 0.0
    %606 = vmatprep.subr.mxu0 0.0
    %607 = vmatpush1.msra.mxu0 0.0
    %608 = vmatprep.subr.mxu0 0.0
    %609 = vmatpush1.msra.mxu0 0.0
    %610 = vmatprep.subr.mxu0 0.0
    %611 = vmatpush1.msra.mxu0 0.0
    %612 = vmatprep.subr.mxu0 0.0
    %613 = vmatpush1.msra.mxu0 0.0
    %614 = vmatprep.subr.mxu0 0.0
    %615 = vmatpush1.msra.mxu0 0.0
    %616 = vmatprep.subr.mxu0 0.0
    %617 = vmatpush1.msra.mxu0 0.0
    %618 = vmatprep.subr.mxu0 0.0
    %619 = vmatpush1.msra.mxu0 0.0
    %620 = vmatprep.subr.mxu0 0.0
    %621 = vmatpush1.msra.mxu0 0.0
    %622 = vmatprep.subr.mxu0 0.0
    %623 = vmatpush1.msra.mxu0 0.0
    %624 = vmatprep.subr.mxu0 0.0
    %625 = vmatpush1.msra.mxu0 0.0
    %626 = vmatprep.subr.mxu0 0.0
    %627 = vmatpush1.msra.mxu0 0.0
    %628 = vmatprep.subr.mxu0 0.0
    %629 = vmatpush1.msra.mxu0 0.0
    %630 = vmatprep.subr.mxu0 0.0
    %631 = vmatpush1.msra.mxu0 0.0
    %632 = vmatprep.mubr.f32.mxu0 0.0
    %633 = vmatmul.mubr.f32.gmra.mrb[0].mxu0 %v566
    %v634 = vpop.f32.mrb[0].mxu0
    %v635 = vadd.f32 %v261, %v634
    %v636 = vpop.f32.mrb[0].mxu0
    %637 = vdwg.mxu0
    %v638 = vtanh.pop %v635
    %v639 = vmul.f32 %v638, 0.5
    %v640 = vadd.f32 %v639, 0.5
    %v641 = vsel %vm265, %v640, %v638
    %v642 = vmul.f32 %v641, %v455
    %644 = vrot.lane.b32.xlu0 %v641, 32
    %v645 = vpop.permute.xlu0 %644
    %v647 = vmul.f32 %v641, %v645
    %649 = vrot.lane.b32.xlu0 %v647, 32
    %v650 = vpop.permute.xlu0 %649
    %v652 = vadd.f32 %v642, %v650
    %v653 = vtanh.pop %v652
    %655 = vrot.lane.b32.xlu0 %v653, 32
    %v656 = vpop.permute.xlu0 %655
    %v658 = vmul.f32 %v641, %v656
    %v659 = vsel %vm266, %v558, 0
    %661 = vmatprep.subr.mxu0 0.0
    %662 = vmatpush1.msra.mxu0 %v244
    %663 = vmatprep.subr.mxu0 0.0
    %664 = vmatpush1.msra.mxu0 %v245
    %665 = vmatprep.subr.mxu0 0.0
    %666 = vmatpush1.msra.mxu0 %v246
    %667 = vmatprep.subr.mxu0 0.0
    %668 = vmatpush1.msra.mxu0 %v247
    %669 = vmatprep.subr.mxu0 0.0
    %670 = vmatpush1.msra.mxu0 0.0
    %671 = vmatprep.subr.mxu0 0.0
    %672 = vmatpush1.msra.mxu0 0.0
    %673 = vmatprep.subr.mxu0 0.0
    %674 = vmatpush1.msra.mxu0 0.0
    %675 = vmatprep.subr.mxu0 0.0
    %676 = vmatpush1.msra.mxu0 0.0
    %677 = vmatprep.subr.mxu0 0.0
    %678 = vmatpush1.msra.mxu0 0.0
    %679 = vmatprep.subr.mxu0 0.0
    %680 = vmatpush1.msra.mxu0 0.0
    %681 = vmatprep.subr.mxu0 0.0
    %682 = vmatpush1.msra.mxu0 0.0
    %683 = vmatprep.subr.mxu0 0.0
    %684 = vmatpush1.msra.mxu0 0.0
    %685 = vmatprep.subr.mxu0 0.0
    %686 = vmatpush1.msra.mxu0 0.0
    %687 = vmatprep.subr.mxu0 0.0
    %688 = vmatpush1.msra.mxu0 0.0
    %689 = vmatprep.subr.mxu0 0.0
    %690 = vmatpush1.msra.mxu0 0.0
    %691 = vmatprep.subr.mxu0 0.0
    %692 = vmatpush1.msra.mxu0 0.0
    %693 = vmatprep.subr.mxu0 0.0
    %694 = vmatpush1.msra.mxu0 0.0
    %695 = vmatprep.subr.mxu0 0.0
    %696 = vmatpush1.msra.mxu0 0.0
    %697 = vmatprep.subr.mxu0 0.0
    %698 = vmatpush1.msra.mxu0 0.0
    %699 = vmatprep.subr.mxu0 0.0
    %700 = vmatpush1.msra.mxu0 0.0
    %701 = vmatprep.subr.mxu0 0.0
    %702 = vmatpush1.msra.mxu0 0.0
    %703 = vmatprep.subr.mxu0 0.0
    %704 = vmatpush1.msra.mxu0 0.0
    %705 = vmatprep.subr.mxu0 0.0
    %706 = vmatpush1.msra.mxu0 0.0
    %707 = vmatprep.subr.mxu0 0.0
    %708 = vmatpush1.msra.mxu0 0.0
    %709 = vmatprep.subr.mxu0 0.0
    %710 = vmatpush1.msra.mxu0 0.0
    %711 = vmatprep.subr.mxu0 0.0
    %712 = vmatpush1.msra.mxu0 0.0
    %713 = vmatprep.subr.mxu0 0.0
    %714 = vmatpush1.msra.mxu0 0.0
    %715 = vmatprep.subr.mxu0 0.0
    %716 = vmatpush1.msra.mxu0 0.0
    %717 = vmatprep.subr.mxu0 0.0
    %718 = vmatpush1.msra.mxu0 0.0
    %719 = vmatprep.subr.mxu0 0.0
    %720 = vmatpush1.msra.mxu0 0.0
    %721 = vmatprep.subr.mxu0 0.0
    %722 = vmatpush1.msra.mxu0 0.0
    %723 = vmatprep.subr.mxu0 0.0
    %724 = vmatpush1.msra.mxu0 0.0
    %725 = vmatprep.mubr.f32.mxu0 0.0
    %726 = vmatmul.mubr.f32.gmra.mrb[0].mxu0 %v659
    %v727 = vpop.f32.mrb[0].mxu0
    %v728 = vadd.f32 0.0, %v727
    %v729 = vpop.f32.mrb[0].mxu0
    %730 = vdwg.mxu0
    %v731 = vadd.f32 %v216, %v728
    %v732 = vtanh.pop %v731
    %v733 = vmul.f32 %v732, 0.5
    %v734 = vadd.f32 %v733, 0.5
    %v735 = vsel %vm265, %v734, %v732
    %v736 = vmul.f32 %v735, %v549
    %738 = vrot.lane.b32.xlu0 %v735, 32
    %v739 = vpop.permute.xlu0 %738
    %v741 = vmul.f32 %v735, %v739
    %743 = vrot.lane.b32.xlu0 %v741, 32
    %v744 = vpop.permute.xlu0 %743
    %v746 = vadd.f32 %v736, %v744
    %v747 = vtanh.pop %v746
    %749 = vrot.lane.b32.xlu0 %v747, 32
    %v750 = vpop.permute.xlu0 %749
    %v752 = vmul.f32 %v735, %v750
    %754 = vrot.lane.b32.xlu0 %v752, 64
    %v755 = vpop.permute.xlu0 %754
    %758 = vrot.lane.b32.xlu0 %v658, 96
    %v759 = vpop.permute.xlu0 %758
    %v761 = vsel %vm266, %v755, %v759
    %v763 = vsel %vm367, %v761, 0
    %765 = vmatprep.subr.mxu0 0.0
    %766 = vmatpush1.msra.mxu0 %v248
    %767 = vmatprep.subr.mxu0 0.0
    %768 = vmatpush1.msra.mxu0 %v249
    %769 = vmatprep.subr.mxu0 0.0
    %770 = vmatpush1.msra.mxu0 %v250
    %771 = vmatprep.subr.mxu0 0.0
    %772 = vmatpush1.msra.mxu0 %v251
    %773 = vmatprep.subr.mxu0 0.0
    %774 = vmatpush1.msra.mxu0 %v252
    %775 = vmatprep.subr.mxu0 0.0
    %776 = vmatpush1.msra.mxu0 %v253
    %777 = vmatprep.subr.mxu0 0.0
    %778 = vmatpush1.msra.mxu0 %v254
    %779 = vmatprep.subr.mxu0 0.0
    %780 = vmatpush1.msra.mxu0 %v255
    %781 = vmatprep.subr.mxu0 0.0
    %782 = vmatpush1.msra.mxu0 0.0
    %783 = vmatprep.subr.mxu0 0.0
    %784 = vmatpush1.msra.mxu0 0.0
    %785 = vmatprep.subr.mxu0 0.0
    %786 = vmatpush1.msra.mxu0 0.0
    %787 = vmatprep.subr.mxu0 0.0
    %788 = vmatpush1.msra.mxu0 0.0
    %789 = vmatprep.subr.mxu0 0.0
    %790 = vmatpush1.msra.mxu0 0.0
    %791 = vmatprep.subr.mxu0 0.0
    %792 = vmatpush1.msra.mxu0 0.0
    %793 = vmatprep.subr.mxu0 0.0
    %794 = vmatpush1.msra.mxu0 0.0
    %795 = vmatprep.subr.mxu0 0.0
    %796 = vmatpush1.msra.mxu0 0.0
    %797 = vmatprep.subr.mxu0 0.0
    %798 = vmatpush1.msra.mxu0 0.0
    %799 = vmatprep.subr.mxu0 0.0
    %800 = vmatpush1.msra.mxu0 0.0
    %801 = vmatprep.subr.mxu0 0.0
    %802 = vmatpush1.msra.mxu0 0.0
    %803 = vmatprep.subr.mxu0 0.0
    %804 = vmatpush1.msra.mxu0 0.0
    %805 = vmatprep.subr.mxu0 0.0
    %806 = vmatpush1.msra.mxu0 0.0
    %807 = vmatprep.subr.mxu0 0.0
    %808 = vmatpush1.msra.mxu0 0.0
    %809 = vmatprep.subr.mxu0 0.0
    %810 = vmatpush1.msra.mxu0 0.0
    %811 = vmatprep.subr.mxu0 0.0
    %812 = vmatpush1.msra.mxu0 0.0
    %813 = vmatprep.subr.mxu0 0.0
    %814 = vmatpush1.msra.mxu0 0.0
    %815 = vmatprep.subr.mxu0 0.0
    %816 = vmatpush1.msra.mxu0 0.0
    %817 = vmatprep.subr.mxu0 0.0
    %818 = vmatpush1.msra.mxu0 0.0
    %819 = vmatprep.subr.mxu0 0.0
    %820 = vmatpush1.msra.mxu0 0.0
    %821 = vmatprep.subr.mxu0 0.0
    %822 = vmatpush1.msra.mxu0 0.0
    %823 = vmatprep.subr.mxu0 0.0
    %824 = vmatpush1.msra.mxu0 0.0
    %825 = vmatprep.subr.mxu0 0.0
    %826 = vmatpush1.msra.mxu0 0.0
    %827 = vmatprep.subr.mxu0 0.0
    %828 = vmatpush1.msra.mxu0 0.0
    %829 = vmatprep.mubr.f32.mxu0 0.0
    %830 = vmatmul.mubr.f32.gmra.mrb[0].mxu0 %v763
    %v831 = vpop.f32.mrb[0].mxu0
    %v832 = vadd.f32 %v261, %v831
    %v833 = vpop.f32.mrb[0].mxu0
    %834 = vdwg.mxu0
    %v835 = vtanh.pop %v832
    %v836 = vmul.f32 %v835, 0.5
    %v837 = vadd.f32 %v836, 0.5
    %v838 = vsel %vm265, %v837, %v835
    %v839 = vmul.f32 %v838, %v652
    %841 = vrot.lane.b32.xlu0 %v838, 32
    %v842 = vpop.permute.xlu0 %841
    %v844 = vmul.f32 %v838, %v842
    %846 = vrot.lane.b32.xlu0 %v844, 32
    %v847 = vpop.permute.xlu0 %846
    %v849 = vadd.f32 %v839, %v847
    %v850 = vtanh.pop %v849
    %852 = vrot.lane.b32.xlu0 %v850, 32
    %v853 = vpop.permute.xlu0 %852
    %v855 = vmul.f32 %v838, %v853
    %v856 = vsel %vm266, %v755, 0
    %858 = vmatprep.subr.mxu0 0.0
    %859 = vmatpush1.msra.mxu0 %v244
    %860 = vmatprep.subr.mxu0 0.0
    %861 = vmatpush1.msra.mxu0 %v245
    %862 = vmatprep.subr.mxu0 0.0
    %863 = vmatpush1.msra.mxu0 %v246
    %864 = vmatprep.subr.mxu0 0.0
    %865 = vmatpush1.msra.mxu0 %v247
    %866 = vmatprep.subr.mxu0 0.0
    %867 = vmatpush1.msra.mxu0 0.0
    %868 = vmatprep.subr.mxu0 0.0
    %869 = vmatpush1.msra.mxu0 0.0
    %870 = vmatprep.subr.mxu0 0.0
    %871 = vmatpush1.msra.mxu0 0.0
    %872 = vmatprep.subr.mxu0 0.0
    %873 = vmatpush1.msra.mxu0 0.0
    %874 = vmatprep.subr.mxu0 0.0
    %875 = vmatpush1.msra.mxu0 0.0
    %876 = vmatprep.subr.mxu0 0.0
    %877 = vmatpush1.msra.mxu0 0.0
    %878 = vmatprep.subr.mxu0 0.0
    %879 = vmatpush1.msra.mxu0 0.0
    %880 = vmatprep.subr.mxu0 0.0
    %881 = vmatpush1.msra.mxu0 0.0
    %882 = vmatprep.subr.mxu0 0.0
    %883 = vmatpush1.msra.mxu0 0.0
    %884 = vmatprep.subr.mxu0 0.0
    %885 = vmatpush1.msra.mxu0 0.0
    %886 = vmatprep.subr.mxu0 0.0
    %887 = vmatpush1.msra.mxu0 0.0
    %888 = vmatprep.subr.mxu0 0.0
    %889 = vmatpush1.msra.mxu0 0.0
    %890 = vmatprep.subr.mxu0 0.0
    %891 = vmatpush1.msra.mxu0 0.0
    %892 = vmatprep.subr.mxu0 0.0
    %893 = vmatpush1.msra.mxu0 0.0
    %894 = vmatprep.subr.mxu0 0.0
    %895 = vmatpush1.msra.mxu0 0.0
    %896 = vmatprep.subr.mxu0 0.0
    %897 = vmatpush1.msra.mxu0 0.0
    %898 = vmatprep.subr.mxu0 0.0
    %899 = vmatpush1.msra.mxu0 0.0
    %900 = vmatprep.subr.mxu0 0.0
    %901 = vmatpush1.msra.mxu0 0.0
    %902 = vmatprep.subr.mxu0 0.0
    %903 = vmatpush1.msra.mxu0 0.0
    %904 = vmatprep.subr.mxu0 0.0
    %905 = vmatpush1.msra.mxu0 0.0
    %906 = vmatprep.subr.mxu0 0.0
    %907 = vmatpush1.msra.mxu0 0.0
    %908 = vmatprep.subr.mxu0 0.0
    %909 = vmatpush1.msra.mxu0 0.0
    %910 = vmatprep.subr.mxu0 0.0
    %911 = vmatpush1.msra.mxu0 0.0
    %912 = vmatprep.subr.mxu0 0.0
    %913 = vmatpush1.msra.mxu0 0.0
    %914 = vmatprep.subr.mxu0 0.0
    %915 = vmatpush1.msra.mxu0 0.0
    %916 = vmatprep.subr.mxu0 0.0
    %917 = vmatpush1.msra.mxu0 0.0
    %918 = vmatprep.subr.mxu0 0.0
    %919 = vmatpush1.msra.mxu0 0.0
    %920 = vmatprep.subr.mxu0 0.0
    %921 = vmatpush1.msra.mxu0 0.0
    %922 = vmatprep.mubr.f32.mxu0 0.0
    %923 = vmatmul.mubr.f32.gmra.mrb[0].mxu0 %v856
    %v924 = vpop.f32.mrb[0].mxu0
    %v925 = vadd.f32 0.0, %v924
    %v926 = vpop.f32.mrb[0].mxu0
    %927 = vdwg.mxu0
    %v928 = vadd.f32 %v221, %v925
    %v929 = vtanh.pop %v928
    %v930 = vmul.f32 %v929, 0.5
    %v931 = vadd.f32 %v930, 0.5
    %v932 = vsel %vm265, %v931, %v929
    %v933 = vmul.f32 %v932, %v746
    %935 = vrot.lane.b32.xlu0 %v932, 32
    %v936 = vpop.permute.xlu0 %935
    %v938 = vmul.f32 %v932, %v936
    %940 = vrot.lane.b32.xlu0 %v938, 32
    %v941 = vpop.permute.xlu0 %940
    %v943 = vadd.f32 %v933, %v941
    %v944 = vtanh.pop %v943
    %946 = vrot.lane.b32.xlu0 %v944, 32
    %v947 = vpop.permute.xlu0 %946
    %v949 = vmul.f32 %v932, %v947
    %951 = vrot.lane.b32.xlu0 %v949, 64
    %v952 = vpop.permute.xlu0 %951
    %955 = vrot.lane.b32.xlu0 %v855, 96
    %v956 = vpop.permute.xlu0 %955
    %v958 = vsel %vm266, %v952, %v956
    %v960 = vsel %vm367, %v958, 0
    %962 = vmatprep.subr.mxu0 0.0
    %963 = vmatpush1.msra.mxu0 %v248
    %964 = vmatprep.subr.mxu0 0.0
    %965 = vmatpush1.msra.mxu0 %v249
    %966 = vmatprep.subr.mxu0 0.0
    %967 = vmatpush1.msra.mxu0 %v250
    %968 = vmatprep.subr.mxu0 0.0
    %969 = vmatpush1.msra.mxu0 %v251
    %970 = vmatprep.subr.mxu0 0.0
    %971 = vmatpush1.msra.mxu0 %v252
    %972 = vmatprep.subr.mxu0 0.0
    %973 = vmatpush1.msra.mxu0 %v253
    %974 = vmatprep.subr.mxu0 0.0
    %975 = vmatpush1.msra.mxu0 %v254
    %976 = vmatprep.subr.mxu0 0.0
    %977 = vmatpush1.msra.mxu0 %v255
    %978 = vmatprep.subr.mxu0 0.0
    %979 = vmatpush1.msra.mxu0 0.0
    %980 = vmatprep.subr.mxu0 0.0
    %981 = vmatpush1.msra.mxu0 0.0
    %982 = vmatprep.subr.mxu0 0.0
    %983 = vmatpush1.msra.mxu0 0.0
    %984 = vmatprep.subr.mxu0 0.0
    %985 = vmatpush1.msra.mxu0 0.0
    %986 = vmatprep.subr.mxu0 0.0
    %987 = vmatpush1.msra.mxu0 0.0
    %988 = vmatprep.subr.mxu0 0.0
    %989 = vmatpush1.msra.mxu0 0.0
    %990 = vmatprep.subr.mxu0 0.0
    %991 = vmatpush1.msra.mxu0 0.0
    %992 = vmatprep.subr.mxu0 0.0
    %993 = vmatpush1.msra.mxu0 0.0
    %994 = vmatprep.subr.mxu0 0.0
    %995 = vmatpush1.msra.mxu0 0.0
    %996 = vmatprep.subr.mxu0 0.0
    %997 = vmatpush1.msra.mxu0 0.0
    %998 = vmatprep.subr.mxu0 0.0
    %999 = vmatpush1.msra.mxu0 0.0
    %1000 = vmatprep.subr.mxu0 0.0
    %1001 = vmatpush1.msra.mxu0 0.0
    %1002 = vmatprep.subr.mxu0 0.0
    %1003 = vmatpush1.msra.mxu0 0.0
    %1004 = vmatprep.subr.mxu0 0.0
    %1005 = vmatpush1.msra.mxu0 0.0
    %1006 = vmatprep.subr.mxu0 0.0
    %1007 = vmatpush1.msra.mxu0 0.0
    %1008 = vmatprep.subr.mxu0 0.0
    %1009 = vmatpush1.msra.mxu0 0.0
    %1010 = vmatprep.subr.mxu0 0.0
    %1011 = vmatpush1.msra.mxu0 0.0
    %1012 = vmatprep.subr.mxu0 0.0
    %1013 = vmatpush1.msra.mxu0 0.0
    %1014 = vmatprep.subr.mxu0 0.0
    %1015 = vmatpush1.msra.mxu0 0.0
    %1016 = vmatprep.subr.mxu0 0.0
    %1017 = vmatpush1.msra.mxu0 0.0
    %1018 = vmatprep.subr.mxu0 0.0
    %1019 = vmatpush1.msra.mxu0 0.0
    %1020 = vmatprep.subr.mxu0 0.0
    %1021 = vmatpush1.msra.mxu0 0.0
    %1022 = vmatprep.subr.mxu0 0.0
    %1023 = vmatpush1.msra.mxu0 0.0
    %1024 = vmatprep.subr.mxu0 0.0
    %1025 = vmatpush1.msra.mxu0 0.0
    %1026 = vmatprep.mubr.f32.mxu0 0.0
    %1027 = vmatmul.mubr.f32.gmra.mrb[0].mxu0 %v960
    %v1028 = vpop.f32.mrb[0].mxu0
    %v1029 = vadd.f32 %v261, %v1028
    %v1030 = vpop.f32.mrb[0].mxu0
    %1031 = vdwg.mxu0
    %v1032 = vtanh.pop %v1029
    %v1033 = vmul.f32 %v1032, 0.5
    %v1034 = vadd.f32 %v1033, 0.5
    %v1035 = vsel %vm265, %v1034, %v1032
    %v1036 = vmul.f32 %v1035, %v849
    %1038 = vrot.lane.b32.xlu0 %v1035, 32
    %v1039 = vpop.permute.xlu0 %1038
    %v1041 = vmul.f32 %v1035, %v1039
    %1043 = vrot.lane.b32.xlu0 %v1041, 32
    %v1044 = vpop.permute.xlu0 %1043
    %v1046 = vadd.f32 %v1036, %v1044
    %v1047 = vtanh.pop %v1046
    %1049 = vrot.lane.b32.xlu0 %v1047, 32
    %v1050 = vpop.permute.xlu0 %1049
    %v1052 = vmul.f32 %v1035, %v1050
    %v1053 = vsel %vm266, %v952, 0
    %1055 = vmatprep.subr.mxu0 0.0
    %1056 = vmatpush1.msra.mxu0 %v244
    %1057 = vmatprep.subr.mxu0 0.0
    %1058 = vmatpush1.msra.mxu0 %v245
    %1059 = vmatprep.subr.mxu0 0.0
    %1060 = vmatpush1.msra.mxu0 %v246
    %1061 = vmatprep.subr.mxu0 0.0
    %1062 = vmatpush1.msra.mxu0 %v247
    %1063 = vmatprep.subr.mxu0 0.0
    %1064 = vmatpush1.msra.mxu0 0.0
    %1065 = vmatprep.subr.mxu0 0.0
    %1066 = vmatpush1.msra.mxu0 0.0
    %1067 = vmatprep.subr.mxu0 0.0
    %1068 = vmatpush1.msra.mxu0 0.0
    %1069 = vmatprep.subr.mxu0 0.0
    %1070 = vmatpush1.msra.mxu0 0.0
    %1071 = vmatprep.subr.mxu0 0.0
    %1072 = vmatpush1.msra.mxu0 0.0
    %1073 = vmatprep.subr.mxu0 0.0
    %1074 = vmatpush1.msra.mxu0 0.0
    %1075 = vmatprep.subr.mxu0 0.0
    %1076 = vmatpush1.msra.mxu0 0.0
    %1077 = vmatprep.subr.mxu0 0.0
    %1078 = vmatpush1.msra.mxu0 0.0
    %1079 = vmatprep.subr.mxu0 0.0
    %1080 = vmatpush1.msra.mxu0 0.0
    %1081 = vmatprep.subr.mxu0 0.0
    %1082 = vmatpush1.msra.mxu0 0.0
    %1083 = vmatprep.subr.mxu0 0.0
    %1084 = vmatpush1.msra.mxu0 0.0
    %1085 = vmatprep.subr.mxu0 0.0
    %1086 = vmatpush1.msra.mxu0 0.0
    %1087 = vmatprep.subr.mxu0 0.0
    %1088 = vmatpush1.msra.mxu0 0.0
    %1089 = vmatprep.subr.mxu0 0.0
    %1090 = vmatpush1.msra.mxu0 0.0
    %1091 = vmatprep.subr.mxu0 0.0
    %1092 = vmatpush1.msra.mxu0 0.0
    %1093 = vmatprep.subr.mxu0 0.0
    %1094 = vmatpush1.msra.mxu0 0.0
    %1095 = vmatprep.subr.mxu0 0.0
    %1096 = vmatpush1.msra.mxu0 0.0
    %1097 = vmatprep.subr.mxu0 0.0
    %1098 = vmatpush1.msra.mxu0 0.0
    %1099 = vmatprep.subr.mxu0 0.0
    %1100 = vmatpush1.msra.mxu0 0.0
    %1101 = vmatprep.subr.mxu0 0.0
    %1102 = vmatpush1.msra.mxu0 0.0
    %1103 = vmatprep.subr.mxu0 0.0
    %1104 = vmatpush1.msra.mxu0 0.0
    %1105 = vmatprep.subr.mxu0 0.0
    %1106 = vmatpush1.msra.mxu0 0.0
    %1107 = vmatprep.subr.mxu0 0.0
    %1108 = vmatpush1.msra.mxu0 0.0
    %1109 = vmatprep.subr.mxu0 0.0
    %1110 = vmatpush1.msra.mxu0 0.0
    %1111 = vmatprep.subr.mxu0 0.0
    %1112 = vmatpush1.msra.mxu0 0.0
    %1113 = vmatprep.subr.mxu0 0.0
    %1114 = vmatpush1.msra.mxu0 0.0
    %1115 = vmatprep.subr.mxu0 0.0
    %1116 = vmatpush1.msra.mxu0 0.0
    %1117 = vmatprep.subr.mxu0 0.0
    %1118 = vmatpush1.msra.mxu0 0.0
    %1119 = vmatprep.mubr.f32.mxu0 0.0
    %1120 = vmatmul.mubr.f32.gmra.mrb[0].mxu0 %v1053
    %v1121 = vpop.f32.mrb[0].mxu0
    %v1122 = vadd.f32 0.0, %v1121
    %v1123 = vpop.f32.mrb[0].mxu0
    %1124 = vdwg.mxu0
    %v1125 = vadd.f32 %v226, %v1122
    %v1126 = vtanh.pop %v1125
    %v1127 = vmul.f32 %v1126, 0.5
    %v1128 = vadd.f32 %v1127, 0.5
    %v1129 = vsel %vm265, %v1128, %v1126
    %v1130 = vmul.f32 %v1129, %v943
    %1132 = vrot.lane.b32.xlu0 %v1129, 32
    %v1133 = vpop.permute.xlu0 %1132
    %v1135 = vmul.f32 %v1129, %v1133
    %1137 = vrot.lane.b32.xlu0 %v1135, 32
    %v1138 = vpop.permute.xlu0 %1137
    %v1140 = vadd.f32 %v1130, %v1138
    %v1141 = vtanh.pop %v1140
    %1143 = vrot.lane.b32.xlu0 %v1141, 32
    %v1144 = vpop.permute.xlu0 %1143
    %v1146 = vmul.f32 %v1129, %v1144
    %1148 = vrot.lane.b32.xlu0 %v1146, 64
    %v1149 = vpop.permute.xlu0 %1148
    %1152 = vrot.lane.b32.xlu0 %v1052, 96
    %v1153 = vpop.permute.xlu0 %1152
    %v1155 = vsel %vm266, %v1149, %v1153
    %v1157 = vsel %vm367, %v1155, 0
    %1159 = vmatprep.subr.mxu0 0.0
    %1160 = vmatpush1.msra.mxu0 %v248
    %1161 = vmatprep.subr.mxu0 0.0
    %1162 = vmatpush1.msra.mxu0 %v249
    %1163 = vmatprep.subr.mxu0 0.0
    %1164 = vmatpush1.msra.mxu0 %v250
    %1165 = vmatprep.subr.mxu0 0.0
    %1166 = vmatpush1.msra.mxu0 %v251
    %1167 = vmatprep.subr.mxu0 0.0
    %1168 = vmatpush1.msra.mxu0 %v252
    %1169 = vmatprep.subr.mxu0 0.0
    %1170 = vmatpush1.msra.mxu0 %v253
    %1171 = vmatprep.subr.mxu0 0.0
    %1172 = vmatpush1.msra.mxu0 %v254
    %1173 = vmatprep.subr.mxu0 0.0
    %1174 = vmatpush1.msra.mxu0 %v255
    %1175 = vmatprep.subr.mxu0 0.0
    %1176 = vmatpush1.msra.mxu0 0.0
    %1177 = vmatprep.subr.mxu0 0.0
    %1178 = vmatpush1.msra.mxu0 0.0
    %1179 = vmatprep.subr.mxu0 0.0
    %1180 = vmatpush1.msra.mxu0 0.0
    %1181 = vmatprep.subr.mxu0 0.0
    %1182 = vmatpush1.msra.mxu0 0.0
    %1183 = vmatprep.subr.mxu0 0.0
    %1184 = vmatpush1.msra.mxu0 0.0
    %1185 = vmatprep.subr.mxu0 0.0
    %1186 = vmatpush1.msra.mxu0 0.0
    %1187 = vmatprep.subr.mxu0 0.0
    %1188 = vmatpush1.msra.mxu0 0.0
    %1189 = vmatprep.subr.mxu0 0.0
    %1190 = vmatpush1.msra.mxu0 0.0
    %1191 = vmatprep.subr.mxu0 0.0
    %1192 = vmatpush1.msra.mxu0 0.0
    %1193 = vmatprep.subr.mxu0 0.0
    %1194 = vmatpush1.msra.mxu0 0.0
    %1195 = vmatprep.subr.mxu0 0.0
    %1196 = vmatpush1.msra.mxu0 0.0
    %1197 = vmatprep.subr.mxu0 0.0
    %1198 = vmatpush1.msra.mxu0 0.0
    %1199 = vmatprep.subr.mxu0 0.0
    %1200 = vmatpush1.msra.mxu0 0.0
    %1201 = vmatprep.subr.mxu0 0.0
    %1202 = vmatpush1.msra.mxu0 0.0
    %1203 = vmatprep.subr.mxu0 0.0
    %1204 = vmatpush1.msra.mxu0 0.0
    %1205 = vmatprep.subr.mxu0 0.0
    %1206 = vmatpush1.msra.mxu0 0.0
    %1207 = vmatprep.subr.mxu0 0.0
    %1208 = vmatpush1.msra.mxu0 0.0
    %1209 = vmatprep.subr.mxu0 0.0
    %1210 = vmatpush1.msra.mxu0 0.0
    %1211 = vmatprep.subr.mxu0 0.0
    %1212 = vmatpush1.msra.mxu0 0.0
    %1213 = vmatprep.subr.mxu0 0.0
    %1214 = vmatpush1.msra.mxu0 0.0
    %1215 = vmatprep.subr.mxu0 0.0
    %1216 = vmatpush1.msra.mxu0 0.0
    %1217 = vmatprep.subr.mxu0 0.0
    %1218 = vmatpush1.msra.mxu0 0.0
    %1219 = vmatprep.subr.mxu0 0.0
    %1220 = vmatpush1.msra.mxu0 0.0
    %1221 = vmatprep.subr.mxu0 0.0
    %1222 = vmatpush1.msra.mxu0 0.0
    %1223 = vmatprep.mubr.f32.mxu0 0.0
    %1224 = vmatmul.mubr.f32.gmra.mrb[0].mxu0 %v1157
    %v1225 = vpop.f32.mrb[0].mxu0
    %v1226 = vadd.f32 %v261, %v1225
    %v1227 = vpop.f32.mrb[0].mxu0
    %1228 = vdwg.mxu0
    %v1229 = vtanh.pop %v1226
    %v1230 = vmul.f32 %v1229, 0.5
    %v1231 = vadd.f32 %v1230, 0.5
    %v1232 = vsel %vm265, %v1231, %v1229
    %v1233 = vmul.f32 %v1232, %v1046
    %1235 = vrot.lane.b32.xlu0 %v1232, 32
    %v1236 = vpop.permute.xlu0 %1235
    %v1238 = vmul.f32 %v1232, %v1236
    %1240 = vrot.lane.b32.xlu0 %v1238, 32
    %v1241 = vpop.permute.xlu0 %1240
    %v1243 = vadd.f32 %v1233, %v1241
    %v1244 = vtanh.pop %v1243
    %1246 = vrot.lane.b32.xlu0 %v1244, 32
    %v1247 = vpop.permute.xlu0 %1246
    %v1249 = vmul.f32 %v1232, %v1247
    %v1250 = vsel %vm266, %v1149, 0
    %1252 = vmatprep.subr.mxu0 0.0
    %1253 = vmatpush1.msra.mxu0 %v244
    %1254 = vmatprep.subr.mxu0 0.0
    %1255 = vmatpush1.msra.mxu0 %v245
    %1256 = vmatprep.subr.mxu0 0.0
    %1257 = vmatpush1.msra.mxu0 %v246
    %1258 = vmatprep.subr.mxu0 0.0
    %1259 = vmatpush1.msra.mxu0 %v247
    %1260 = vmatprep.subr.mxu0 0.0
    %1261 = vmatpush1.msra.mxu0 0.0
    %1262 = vmatprep.subr.mxu0 0.0
    %1263 = vmatpush1.msra.mxu0 0.0
    %1264 = vmatprep.subr.mxu0 0.0
    %1265 = vmatpush1.msra.mxu0 0.0
    %1266 = vmatprep.subr.mxu0 0.0
    %1267 = vmatpush1.msra.mxu0 0.0
    %1268 = vmatprep.subr.mxu0 0.0
    %1269 = vmatpush1.msra.mxu0 0.0
    %1270 = vmatprep.subr.mxu0 0.0
    %1271 = vmatpush1.msra.mxu0 0.0
    %1272 = vmatprep.subr.mxu0 0.0
    %1273 = vmatpush1.msra.mxu0 0.0
    %1274 = vmatprep.subr.mxu0 0.0
    %1275 = vmatpush1.msra.mxu0 0.0
    %1276 = vmatprep.subr.mxu0 0.0
    %1277 = vmatpush1.msra.mxu0 0.0
    %1278 = vmatprep.subr.mxu0 0.0
    %1279 = vmatpush1.msra.mxu0 0.0
    %1280 = vmatprep.subr.mxu0 0.0
    %1281 = vmatpush1.msra.mxu0 0.0
    %1282 = vmatprep.subr.mxu0 0.0
    %1283 = vmatpush1.msra.mxu0 0.0
    %1284 = vmatprep.subr.mxu0 0.0
    %1285 = vmatpush1.msra.mxu0 0.0
    %1286 = vmatprep.subr.mxu0 0.0
    %1287 = vmatpush1.msra.mxu0 0.0
    %1288 = vmatprep.subr.mxu0 0.0
    %1289 = vmatpush1.msra.mxu0 0.0
    %1290 = vmatprep.subr.mxu0 0.0
    %1291 = vmatpush1.msra.mxu0 0.0
    %1292 = vmatprep.subr.mxu0 0.0
    %1293 = vmatpush1.msra.mxu0 0.0
    %1294 = vmatprep.subr.mxu0 0.0
    %1295 = vmatpush1.msra.mxu0 0.0
    %1296 = vmatprep.subr.mxu0 0.0
    %1297 = vmatpush1.msra.mxu0 0.0
    %1298 = vmatprep.subr.mxu0 0.0
    %1299 = vmatpush1.msra.mxu0 0.0
    %1300 = vmatprep.subr.mxu0 0.0
    %1301 = vmatpush1.msra.mxu0 0.0
    %1302 = vmatprep.subr.mxu0 0.0
    %1303 = vmatpush1.msra.mxu0 0.0
    %1304 = vmatprep.subr.mxu0 0.0
    %1305 = vmatpush1.msra.mxu0 0.0
    %1306 = vmatprep.subr.mxu0 0.0
    %1307 = vmatpush1.msra.mxu0 0.0
    %1308 = vmatprep.subr.mxu0 0.0
    %1309 = vmatpush1.msra.mxu0 0.0
    %1310 = vmatprep.subr.mxu0 0.0
    %1311 = vmatpush1.msra.mxu0 0.0
    %1312 = vmatprep.subr.mxu0 0.0
    %1313 = vmatpush1.msra.mxu0 0.0
    %1314 = vmatprep.subr.mxu0 0.0
    %1315 = vmatpush1.msra.mxu0 0.0
    %1316 = vmatprep.mubr.f32.mxu0 0.0
    %1317 = vmatmul.mubr.f32.gmra.mrb[0].mxu0 %v1250
    %v1318 = vpop.f32.mrb[0].mxu0
    %v1319 = vadd.f32 0.0, %v1318
    %v1320 = vpop.f32.mrb[0].mxu0
    %1321 = vdwg.mxu0
    %v1322 = vadd.f32 %v231, %v1319
    %v1323 = vtanh.pop %v1322
    %v1324 = vmul.f32 %v1323, 0.5
    %v1325 = vadd.f32 %v1324, 0.5
    %v1326 = vsel %vm265, %v1325, %v1323
    %v1327 = vmul.f32 %v1326, %v1140
    %1329 = vrot.lane.b32.xlu0 %v1326, 32
    %v1330 = vpop.permute.xlu0 %1329
    %v1332 = vmul.f32 %v1326, %v1330
    %1334 = vrot.lane.b32.xlu0 %v1332, 32
    %v1335 = vpop.permute.xlu0 %1334
    %v1337 = vadd.f32 %v1327, %v1335
    %v1338 = vtanh.pop %v1337
    %1340 = vrot.lane.b32.xlu0 %v1338, 32
    %v1341 = vpop.permute.xlu0 %1340
    %v1343 = vmul.f32 %v1326, %v1341
    %1345 = vrot.lane.b32.xlu0 %v1343, 64
    %v1346 = vpop.permute.xlu0 %1345
    %1349 = vrot.lane.b32.xlu0 %v1249, 96
    %v1350 = vpop.permute.xlu0 %1349
    %v1352 = vsel %vm266, %v1346, %v1350
    %v1354 = vsel %vm367, %v1352, 0
    %1356 = vmatprep.subr.mxu0 0.0
    %1357 = vmatpush1.msra.mxu0 %v248
    %1358 = vmatprep.subr.mxu0 0.0
    %1359 = vmatpush1.msra.mxu0 %v249
    %1360 = vmatprep.subr.mxu0 0.0
    %1361 = vmatpush1.msra.mxu0 %v250
    %1362 = vmatprep.subr.mxu0 0.0
    %1363 = vmatpush1.msra.mxu0 %v251
    %1364 = vmatprep.subr.mxu0 0.0
    %1365 = vmatpush1.msra.mxu0 %v252
    %1366 = vmatprep.subr.mxu0 0.0
    %1367 = vmatpush1.msra.mxu0 %v253
    %1368 = vmatprep.subr.mxu0 0.0
    %1369 = vmatpush1.msra.mxu0 %v254
    %1370 = vmatprep.subr.mxu0 0.0
    %1371 = vmatpush1.msra.mxu0 %v255
    %1372 = vmatprep.subr.mxu0 0.0
    %1373 = vmatpush1.msra.mxu0 0.0
    %1374 = vmatprep.subr.mxu0 0.0
    %1375 = vmatpush1.msra.mxu0 0.0
    %1376 = vmatprep.subr.mxu0 0.0
    %1377 = vmatpush1.msra.mxu0 0.0
    %1378 = vmatprep.subr.mxu0 0.0
    %1379 = vmatpush1.msra.mxu0 0.0
    %1380 = vmatprep.subr.mxu0 0.0
    %1381 = vmatpush1.msra.mxu0 0.0
    %1382 = vmatprep.subr.mxu0 0.0
    %1383 = vmatpush1.msra.mxu0 0.0
    %1384 = vmatprep.subr.mxu0 0.0
    %1385 = vmatpush1.msra.mxu0 0.0
    %1386 = vmatprep.subr.mxu0 0.0
    %1387 = vmatpush1.msra.mxu0 0.0
    %1388 = vmatprep.subr.mxu0 0.0
    %1389 = vmatpush1.msra.mxu0 0.0
    %1390 = vmatprep.subr.mxu0 0.0
    %1391 = vmatpush1.msra.mxu0 0.0
    %1392 = vmatprep.subr.mxu0 0.0
    %1393 = vmatpush1.msra.mxu0 0.0
    %1394 = vmatprep.subr.mxu0 0.0
    %1395 = vmatpush1.msra.mxu0 0.0
    %1396 = vmatprep.subr.mxu0 0.0
    %1397 = vmatpush1.msra.mxu0 0.0
    %1398 = vmatprep.subr.mxu0 0.0
    %1399 = vmatpush1.msra.mxu0 0.0
    %1400 = vmatprep.subr.mxu0 0.0
    %1401 = vmatpush1.msra.mxu0 0.0
    %1402 = vmatprep.subr.mxu0 0.0
    %1403 = vmatpush1.msra.mxu0 0.0
    %1404 = vmatprep.subr.mxu0 0.0
    %1405 = vmatpush1.msra.mxu0 0.0
    %1406 = vmatprep.subr.mxu0 0.0
    %1407 = vmatpush1.msra.mxu0 0.0
    %1408 = vmatprep.subr.mxu0 0.0
    %1409 = vmatpush1.msra.mxu0 0.0
    %1410 = vmatprep.subr.mxu0 0.0
    %1411 = vmatpush1.msra.mxu0 0.0
    %1412 = vmatprep.subr.mxu0 0.0
    %1413 = vmatpush1.msra.mxu0 0.0
    %1414 = vmatprep.subr.mxu0 0.0
    %1415 = vmatpush1.msra.mxu0 0.0
    %1416 = vmatprep.subr.mxu0 0.0
    %1417 = vmatpush1.msra.mxu0 0.0
    %1418 = vmatprep.subr.mxu0 0.0
    %1419 = vmatpush1.msra.mxu0 0.0
    %1420 = vmatprep.mubr.f32.mxu0 0.0
    %1421 = vmatmul.mubr.f32.gmra.mrb[0].mxu0 %v1354
    %v1422 = vpop.f32.mrb[0].mxu0
    %v1423 = vadd.f32 %v261, %v1422
    %v1424 = vpop.f32.mrb[0].mxu0
    %1425 = vdwg.mxu0
    %v1426 = vtanh.pop %v1423
    %v1427 = vmul.f32 %v1426, 0.5
    %v1428 = vadd.f32 %v1427, 0.5
    %v1429 = vsel %vm265, %v1428, %v1426
    %v1430 = vmul.f32 %v1429, %v1243
    %1432 = vrot.lane.b32.xlu0 %v1429, 32
    %v1433 = vpop.permute.xlu0 %1432
    %v1435 = vmul.f32 %v1429, %v1433
    %1437 = vrot.lane.b32.xlu0 %v1435, 32
    %v1438 = vpop.permute.xlu0 %1437
    %v1440 = vadd.f32 %v1430, %v1438
    %v1441 = vtanh.pop %v1440
    %1443 = vrot.lane.b32.xlu0 %v1441, 32
    %v1444 = vpop.permute.xlu0 %1443
    %v1446 = vmul.f32 %v1429, %v1444
    %v1447 = vsel %vm266, %v1346, 0
    %1449 = vmatprep.subr.mxu0 0.0
    %1450 = vmatpush1.msra.mxu0 %v244
    %1451 = vmatprep.subr.mxu0 0.0
    %1452 = vmatpush1.msra.mxu0 %v245
    %1453 = vmatprep.subr.mxu0 0.0
    %1454 = vmatpush1.msra.mxu0 %v246
    %1455 = vmatprep.subr.mxu0 0.0
    %1456 = vmatpush1.msra.mxu0 %v247
    %1457 = vmatprep.subr.mxu0 0.0
    %1458 = vmatpush1.msra.mxu0 0.0
    %1459 = vmatprep.subr.mxu0 0.0
    %1460 = vmatpush1.msra.mxu0 0.0
    %1461 = vmatprep.subr.mxu0 0.0
    %1462 = vmatpush1.msra.mxu0 0.0
    %1463 = vmatprep.subr.mxu0 0.0
    %1464 = vmatpush1.msra.mxu0 0.0
    %1465 = vmatprep.subr.mxu0 0.0
    %1466 = vmatpush1.msra.mxu0 0.0
    %1467 = vmatprep.subr.mxu0 0.0
    %1468 = vmatpush1.msra.mxu0 0.0
    %1469 = vmatprep.subr.mxu0 0.0
    %1470 = vmatpush1.msra.mxu0 0.0
    %1471 = vmatprep.subr.mxu0 0.0
    %1472 = vmatpush1.msra.mxu0 0.0
    %1473 = vmatprep.subr.mxu0 0.0
    %1474 = vmatpush1.msra.mxu0 0.0
    %1475 = vmatprep.subr.mxu0 0.0
    %1476 = vmatpush1.msra.mxu0 0.0
    %1477 = vmatprep.subr.mxu0 0.0
    %1478 = vmatpush1.msra.mxu0 0.0
    %1479 = vmatprep.subr.mxu0 0.0
    %1480 = vmatpush1.msra.mxu0 0.0
    %1481 = vmatprep.subr.mxu0 0.0
    %1482 = vmatpush1.msra.mxu0 0.0
    %1483 = vmatprep.subr.mxu0 0.0
    %1484 = vmatpush1.msra.mxu0 0.0
    %1485 = vmatprep.subr.mxu0 0.0
    %1486 = vmatpush1.msra.mxu0 0.0
    %1487 = vmatprep.subr.mxu0 0.0
    %1488 = vmatpush1.msra.mxu0 0.0
    %1489 = vmatprep.subr.mxu0 0.0
    %1490 = vmatpush1.msra.mxu0 0.0
    %1491 = vmatprep.subr.mxu0 0.0
    %1492 = vmatpush1.msra.mxu0 0.0
    %1493 = vmatprep.subr.mxu0 0.0
    %1494 = vmatpush1.msra.mxu0 0.0
    %1495 = vmatprep.subr.mxu0 0.0
    %1496 = vmatpush1.msra.mxu0 0.0
    %1497 = vmatprep.subr.mxu0 0.0
    %1498 = vmatpush1.msra.mxu0 0.0
    %1499 = vmatprep.subr.mxu0 0.0
    %1500 = vmatpush1.msra.mxu0 0.0
    %1501 = vmatprep.subr.mxu0 0.0
    %1502 = vmatpush1.msra.mxu0 0.0
    %1503 = vmatprep.subr.mxu0 0.0
    %1504 = vmatpush1.msra.mxu0 0.0
    %1505 = vmatprep.subr.mxu0 0.0
    %1506 = vmatpush1.msra.mxu0 0.0
    %1507 = vmatprep.subr.mxu0 0.0
    %1508 = vmatpush1.msra.mxu0 0.0
    %1509 = vmatprep.subr.mxu0 0.0
    %1510 = vmatpush1.msra.mxu0 0.0
    %1511 = vmatprep.subr.mxu0 0.0
    %1512 = vmatpush1.msra.mxu0 0.0
    %1513 = vmatprep.mubr.f32.mxu0 0.0
    %1514 = vmatmul.mubr.f32.gmra.mrb[0].mxu0 %v1447
    %v1515 = vpop.f32.mrb[0].mxu0
    %v1516 = vadd.f32 0.0, %v1515
    %v1517 = vpop.f32.mrb[0].mxu0
    %1518 = vdwg.mxu0
    %v1519 = vadd.f32 %v236, %v1516
    %v1520 = vtanh.pop %v1519
    %v1521 = vmul.f32 %v1520, 0.5
    %v1522 = vadd.f32 %v1521, 0.5
    %v1523 = vsel %vm265, %v1522, %v1520
    %v1524 = vmul.f32 %v1523, %v1337
    %1526 = vrot.lane.b32.xlu0 %v1523, 32
    %v1527 = vpop.permute.xlu0 %1526
    %v1529 = vmul.f32 %v1523, %v1527
    %1531 = vrot.lane.b32.xlu0 %v1529, 32
    %v1532 = vpop.permute.xlu0 %1531
    %v1534 = vadd.f32 %v1524, %v1532
    %v1535 = vtanh.pop %v1534
    %1537 = vrot.lane.b32.xlu0 %v1535, 32
    %v1538 = vpop.permute.xlu0 %1537
    %v1540 = vmul.f32 %v1523, %v1538
    %1542 = vrot.lane.b32.xlu0 %v1540, 64
    %v1543 = vpop.permute.xlu0 %1542
    %1546 = vrot.lane.b32.xlu0 %v1446, 96
    %v1547 = vpop.permute.xlu0 %1546
    %v1549 = vsel %vm266, %v1543, %v1547
    %v1551 = vsel %vm367, %v1549, 0
    %1553 = vmatprep.subr.mxu0 0.0
    %1554 = vmatpush1.msra.mxu0 %v248
    %1555 = vmatprep.subr.mxu0 0.0
    %1556 = vmatpush1.msra.mxu0 %v249
    %1557 = vmatprep.subr.mxu0 0.0
    %1558 = vmatpush1.msra.mxu0 %v250
    %1559 = vmatprep.subr.mxu0 0.0
    %1560 = vmatpush1.msra.mxu0 %v251
    %1561 = vmatprep.subr.mxu0 0.0
    %1562 = vmatpush1.msra.mxu0 %v252
    %1563 = vmatprep.subr.mxu0 0.0
    %1564 = vmatpush1.msra.mxu0 %v253
    %1565 = vmatprep.subr.mxu0 0.0
    %1566 = vmatpush1.msra.mxu0 %v254
    %1567 = vmatprep.subr.mxu0 0.0
    %1568 = vmatpush1.msra.mxu0 %v255
    %1569 = vmatprep.subr.mxu0 0.0
    %1570 = vmatpush1.msra.mxu0 0.0
    %1571 = vmatprep.subr.mxu0 0.0
    %1572 = vmatpush1.msra.mxu0 0.0
    %1573 = vmatprep.subr.mxu0 0.0
    %1574 = vmatpush1.msra.mxu0 0.0
    %1575 = vmatprep.subr.mxu0 0.0
    %1576 = vmatpush1.msra.mxu0 0.0
    %1577 = vmatprep.subr.mxu0 0.0
    %1578 = vmatpush1.msra.mxu0 0.0
    %1579 = vmatprep.subr.mxu0 0.0
    %1580 = vmatpush1.msra.mxu0 0.0
    %1581 = vmatprep.subr.mxu0 0.0
    %1582 = vmatpush1.msra.mxu0 0.0
    %1583 = vmatprep.subr.mxu0 0.0
    %1584 = vmatpush1.msra.mxu0 0.0
    %1585 = vmatprep.subr.mxu0 0.0
    %1586 = vmatpush1.msra.mxu0 0.0
    %1587 = vmatprep.subr.mxu0 0.0
    %1588 = vmatpush1.msra.mxu0 0.0
    %1589 = vmatprep.subr.mxu0 0.0
    %1590 = vmatpush1.msra.mxu0 0.0
    %1591 = vmatprep.subr.mxu0 0.0
    %1592 = vmatpush1.msra.mxu0 0.0
    %1593 = vmatprep.subr.mxu0 0.0
    %1594 = vmatpush1.msra.mxu0 0.0
    %1595 = vmatprep.subr.mxu0 0.0
    %1596 = vmatpush1.msra.mxu0 0.0
    %1597 = vmatprep.subr.mxu0 0.0
    %1598 = vmatpush1.msra.mxu0 0.0
    %1599 = vmatprep.subr.mxu0 0.0
    %1600 = vmatpush1.msra.mxu0 0.0
    %1601 = vmatprep.subr.mxu0 0.0
    %1602 = vmatpush1.msra.mxu0 0.0
    %1603 = vmatprep.subr.mxu0 0.0
    %1604 = vmatpush1.msra.mxu0 0.0
    %1605 = vmatprep.subr.mxu0 0.0
    %1606 = vmatpush1.msra.mxu0 0.0
    %1607 = vmatprep.subr.mxu0 0.0
    %1608 = vmatpush1.msra.mxu0 0.0
    %1609 = vmatprep.subr.mxu0 0.0
    %1610 = vmatpush1.msra.mxu0 0.0
    %1611 = vmatprep.subr.mxu0 0.0
    %1612 = vmatpush1.msra.mxu0 0.0
    %1613 = vmatprep.subr.mxu0 0.0
    %1614 = vmatpush1.msra.mxu0 0.0
    %1615 = vmatprep.subr.mxu0 0.0
    %1616 = vmatpush1.msra.mxu0 0.0
    %1617 = vmatprep.mubr.f32.mxu0 0.0
    %1618 = vmatmul.mubr.f32.gmra.mrb[0].mxu0 %v1551
    %v1619 = vpop.f32.mrb[0].mxu0
    %v1620 = vadd.f32 %v261, %v1619
    %v1621 = vpop.f32.mrb[0].mxu0
    %1622 = vdwg.mxu0
    %v1623 = vtanh.pop %v1620
    %v1624 = vmul.f32 %v1623, 0.5
    %v1625 = vadd.f32 %v1624, 0.5
    %v1626 = vsel %vm265, %v1625, %v1623
    %v1627 = vmul.f32 %v1626, %v1440
    %1629 = vrot.lane.b32.xlu0 %v1626, 32
    %v1630 = vpop.permute.xlu0 %1629
    %v1632 = vmul.f32 %v1626, %v1630
    %1634 = vrot.lane.b32.xlu0 %v1632, 32
    %v1635 = vpop.permute.xlu0 %1634
    %v1637 = vadd.f32 %v1627, %v1635
    %v1638 = vtanh.pop %v1637
    %1640 = vrot.lane.b32.xlu0 %v1638, 32
    %v1641 = vpop.permute.xlu0 %1640
    %v1643 = vmul.f32 %v1626, %v1641
    %v1644 = vsel %vm266, %v1543, 0
    %1646 = vmatprep.subr.mxu0 0.0
    %1647 = vmatpush1.msra.mxu0 %v244
    %1648 = vmatprep.subr.mxu0 0.0
    %1649 = vmatpush1.msra.mxu0 %v245
    %1650 = vmatprep.subr.mxu0 0.0
    %1651 = vmatpush1.msra.mxu0 %v246
    %1652 = vmatprep.subr.mxu0 0.0
    %1653 = vmatpush1.msra.mxu0 %v247
    %1654 = vmatprep.subr.mxu0 0.0
    %1655 = vmatpush1.msra.mxu0 0.0
    %1656 = vmatprep.subr.mxu0 0.0
    %1657 = vmatpush1.msra.mxu0 0.0
    %1658 = vmatprep.subr.mxu0 0.0
    %1659 = vmatpush1.msra.mxu0 0.0
    %1660 = vmatprep.subr.mxu0 0.0
    %1661 = vmatpush1.msra.mxu0 0.0
    %1662 = vmatprep.subr.mxu0 0.0
    %1663 = vmatpush1.msra.mxu0 0.0
    %1664 = vmatprep.subr.mxu0 0.0
    %1665 = vmatpush1.msra.mxu0 0.0
    %1666 = vmatprep.subr.mxu0 0.0
    %1667 = vmatpush1.msra.mxu0 0.0
    %1668 = vmatprep.subr.mxu0 0.0
    %1669 = vmatpush1.msra.mxu0 0.0
    %1670 = vmatprep.subr.mxu0 0.0
    %1671 = vmatpush1.msra.mxu0 0.0
    %1672 = vmatprep.subr.mxu0 0.0
    %1673 = vmatpush1.msra.mxu0 0.0
    %1674 = vmatprep.subr.mxu0 0.0
    %1675 = vmatpush1.msra.mxu0 0.0
    %1676 = vmatprep.subr.mxu0 0.0
    %1677 = vmatpush1.msra.mxu0 0.0
    %1678 = vmatprep.subr.mxu0 0.0
    %1679 = vmatpush1.msra.mxu0 0.0
    %1680 = vmatprep.subr.mxu0 0.0
    %1681 = vmatpush1.msra.mxu0 0.0
    %1682 = vmatprep.subr.mxu0 0.0
    %1683 = vmatpush1.msra.mxu0 0.0
    %1684 = vmatprep.subr.mxu0 0.0
    %1685 = vmatpush1.msra.mxu0 0.0
    %1686 = vmatprep.subr.mxu0 0.0
    %1687 = vmatpush1.msra.mxu0 0.0
    %1688 = vmatprep.subr.mxu0 0.0
    %1689 = vmatpush1.msra.mxu0 0.0
    %1690 = vmatprep.subr.mxu0 0.0
    %1691 = vmatpush1.msra.mxu0 0.0
    %1692 = vmatprep.subr.mxu0 0.0
    %1693 = vmatpush1.msra.mxu0 0.0
    %1694 = vmatprep.subr.mxu0 0.0
    %1695 = vmatpush1.msra.mxu0 0.0
    %1696 = vmatprep.subr.mxu0 0.0
    %1697 = vmatpush1.msra.mxu0 0.0
    %1698 = vmatprep.subr.mxu0 0.0
    %1699 = vmatpush1.msra.mxu0 0.0
    %1700 = vmatprep.subr.mxu0 0.0
    %1701 = vmatpush1.msra.mxu0 0.0
    %1702 = vmatprep.subr.mxu0 0.0
    %1703 = vmatpush1.msra.mxu0 0.0
    %1704 = vmatprep.subr.mxu0 0.0
    %1705 = vmatpush1.msra.mxu0 0.0
    %1706 = vmatprep.subr.mxu0 0.0
    %1707 = vmatpush1.msra.mxu0 0.0
    %1708 = vmatprep.subr.mxu0 0.0
    %1709 = vmatpush1.msra.mxu0 0.0
    %1710 = vmatprep.mubr.f32.mxu0 0.0
    %1711 = vmatmul.mubr.f32.gmra.mrb[0].mxu0 %v1644
    %v1712 = vpop.f32.mrb[0].mxu0
    %v1713 = vadd.f32 0.0, %v1712
    %v1714 = vpop.f32.mrb[0].mxu0
    %1715 = vdwg.mxu0
    %v1716 = vadd.f32 %v241, %v1713
    %v1717 = vtanh.pop %v1716
    %v1718 = vmul.f32 %v1717, 0.5
    %v1719 = vadd.f32 %v1718, 0.5
    %v1720 = vsel %vm265, %v1719, %v1717
    %v1721 = vmul.f32 %v1720, %v1534
    %1723 = vrot.lane.b32.xlu0 %v1720, 32
    %v1724 = vpop.permute.xlu0 %1723
    %v1726 = vmul.f32 %v1720, %v1724
    %1728 = vrot.lane.b32.xlu0 %v1726, 32
    %v1729 = vpop.permute.xlu0 %1728
    %v1731 = vadd.f32 %v1721, %v1729
    %v1732 = vtanh.pop %v1731
    %1734 = vrot.lane.b32.xlu0 %v1732, 32
    %v1735 = vpop.permute.xlu0 %1734
    %v1737 = vmul.f32 %v1720, %v1735
    %1739 = vrot.lane.b32.xlu0 %v1737, 64
    %v1740 = vpop.permute.xlu0 %1739
    %1743 = vrot.lane.b32.xlu0 %v1643, 96
    %v1744 = vpop.permute.xlu0 %1743
    %v1746 = vsel %vm266, %v1740, %v1744
    %v1748 = vsel %vm367, %v1746, 0
    %1750 = vmatprep.subr.mxu0 0.0
    %1751 = vmatpush1.msra.mxu0 %v248
    %1752 = vmatprep.subr.mxu0 0.0
    %1753 = vmatpush1.msra.mxu0 %v249
    %1754 = vmatprep.subr.mxu0 0.0
    %1755 = vmatpush1.msra.mxu0 %v250
    %1756 = vmatprep.subr.mxu0 0.0
    %1757 = vmatpush1.msra.mxu0 %v251
    %1758 = vmatprep.subr.mxu0 0.0
    %1759 = vmatpush1.msra.mxu0 %v252
    %1760 = vmatprep.subr.mxu0 0.0
    %1761 = vmatpush1.msra.mxu0 %v253
    %1762 = vmatprep.subr.mxu0 0.0
    %1763 = vmatpush1.msra.mxu0 %v254
    %1764 = vmatprep.subr.mxu0 0.0
    %1765 = vmatpush1.msra.mxu0 %v255
    %1766 = vmatprep.subr.mxu0 0.0
    %1767 = vmatpush1.msra.mxu0 0.0
    %1768 = vmatprep.subr.mxu0 0.0
    %1769 = vmatpush1.msra.mxu0 0.0
    %1770 = vmatprep.subr.mxu0 0.0
    %1771 = vmatpush1.msra.mxu0 0.0
    %1772 = vmatprep.subr.mxu0 0.0
    %1773 = vmatpush1.msra.mxu0 0.0
    %1774 = vmatprep.subr.mxu0 0.0
    %1775 = vmatpush1.msra.mxu0 0.0
    %1776 = vmatprep.subr.mxu0 0.0
    %1777 = vmatpush1.msra.mxu0 0.0
    %1778 = vmatprep.subr.mxu0 0.0
    %1779 = vmatpush1.msra.mxu0 0.0
    %1780 = vmatprep.subr.mxu0 0.0
    %1781 = vmatpush1.msra.mxu0 0.0
    %1782 = vmatprep.subr.mxu0 0.0
    %1783 = vmatpush1.msra.mxu0 0.0
    %1784 = vmatprep.subr.mxu0 0.0
    %1785 = vmatpush1.msra.mxu0 0.0
    %1786 = vmatprep.subr.mxu0 0.0
    %1787 = vmatpush1.msra.mxu0 0.0
    %1788 = vmatprep.subr.mxu0 0.0
    %1789 = vmatpush1.msra.mxu0 0.0
    %1790 = vmatprep.subr.mxu0 0.0
    %1791 = vmatpush1.msra.mxu0 0.0
    %1792 = vmatprep.subr.mxu0 0.0
    %1793 = vmatpush1.msra.mxu0 0.0
    %1794 = vmatprep.subr.mxu0 0.0
    %1795 = vmatpush1.msra.mxu0 0.0
    %1796 = vmatprep.subr.mxu0 0.0
    %1797 = vmatpush1.msra.mxu0 0.0
    %1798 = vmatprep.subr.mxu0 0.0
    %1799 = vmatpush1.msra.mxu0 0.0
    %1800 = vmatprep.subr.mxu0 0.0
    %1801 = vmatpush1.msra.mxu0 0.0
    %1802 = vmatprep.subr.mxu0 0.0
    %1803 = vmatpush1.msra.mxu0 0.0
    %1804 = vmatprep.subr.mxu0 0.0
    %1805 = vmatpush1.msra.mxu0 0.0
    %1806 = vmatprep.subr.mxu0 0.0
    %1807 = vmatpush1.msra.mxu0 0.0
    %1808 = vmatprep.subr.mxu0 0.0
    %1809 = vmatpush1.msra.mxu0 0.0
    %1810 = vmatprep.subr.mxu0 0.0
    %1811 = vmatpush1.msra.mxu0 0.0
    %1812 = vmatprep.subr.mxu0 0.0
    %1813 = vmatpush1.msra.mxu0 0.0
    %1814 = vmatprep.mubr.f32.mxu0 0.0
    %1815 = vmatmul.mubr.f32.gmra.mrb[0].mxu0 %v1748
    %v1816 = vpop.f32.mrb[0].mxu0
    %v1817 = vadd.f32 %v261, %v1816
    %v1818 = vpop.f32.mrb[0].mxu0
    %1819 = vdwg.mxu0
    %v1820 = vtanh.pop %v1817
    %v1821 = vmul.f32 %v1820, 0.5
    %v1822 = vadd.f32 %v1821, 0.5
    %v1823 = vsel %vm265, %v1822, %v1820
    %v1824 = vmul.f32 %v1823, %v1637
    %1826 = vrot.lane.b32.xlu0 %v1823, 32
    %v1827 = vpop.permute.xlu0 %1826
    %v1829 = vmul.f32 %v1823, %v1827
    %1831 = vrot.lane.b32.xlu0 %v1829, 32
    %v1832 = vpop.permute.xlu0 %1831
    %v1834 = vadd.f32 %v1824, %v1832
    %v1835 = vtanh.pop %v1834
    %1837 = vrot.lane.b32.xlu0 %v1835, 32
    %v1838 = vpop.permute.xlu0 %1837
    %v1840 = vmul.f32 %v1823, %v1838
    %v1841 = vmax.f32 %v1737, 0.0
    %v1842 = vmax.f32 %v1840, 0.0
    %v1843 = vld [vmem:[%s6] sm:$0xff]
    %v1844 = vld [vmem:[%s6 + $0x8] sm:$0xff]
    %v1845 = vld [vmem:[%s6 + $0x10] sm:$0xff]
    %v1846 = vld [vmem:[%s6 + $0x18] sm:$0xff]
    %v1847 = vld [vmem:[%s7] sm:$0x1]
    %v1849 = vlaneseq
    %v1850 = vshrl.u32 %v1849, 7
    %v1851 = vsub.s32 0, %v1850
    %v1852 = vrot.slane %v1847, %v1851
    %1856 = vrot.lane.b32.xlu0 %v1841, 64
    %v1857 = vpop.permute.xlu0 %1856
    %1858 = vrot.lane.b32.xlu0 %v1842, 64
    %v1859 = vpop.permute.xlu0 %1858
    %v1860 = vsel %vm266, %v1857, 0
    %v1862 = vsel %vm266, %v1859, 0
    %1864 = vmatprep.subr.mxu0 0.0
    %1865 = vmatpush1.msra.mxu0 %v1843
    %1866 = vmatprep.subr.mxu0 0.0
    %1867 = vmatpush1.msra.mxu0 %v1844
    %1868 = vmatprep.subr.mxu0 0.0
    %1869 = vmatpush1.msra.mxu0 %v1845
    %1870 = vmatprep.subr.mxu0 0.0
    %1871 = vmatpush1.msra.mxu0 %v1846
    %1872 = vmatprep.subr.mxu0 0.0
    %1873 = vmatpush1.msra.mxu0 0.0
    %1874 = vmatprep.subr.mxu0 0.0
    %1875 = vmatpush1.msra.mxu0 0.0
    %1876 = vmatprep.subr.mxu0 0.0
    %1877 = vmatpush1.msra.mxu0 0.0
    %1878 = vmatprep.subr.mxu0 0.0
    %1879 = vmatpush1.msra.mxu0 0.0
    %1880 = vmatprep.subr.mxu0 0.0
    %1881 = vmatpush1.msra.mxu0 0.0
    %1882 = vmatprep.subr.mxu0 0.0
    %1883 = vmatpush1.msra.mxu0 0.0
    %1884 = vmatprep.subr.mxu0 0.0
    %1885 = vmatpush1.msra.mxu0 0.0
    %1886 = vmatprep.subr.mxu0 0.0
    %1887 = vmatpush1.msra.mxu0 0.0
    %1888 = vmatprep.subr.mxu0 0.0
    %1889 = vmatpush1.msra.mxu0 0.0
    %1890 = vmatprep.subr.mxu0 0.0
    %1891 = vmatpush1.msra.mxu0 0.0
    %1892 = vmatprep.subr.mxu0 0.0
    %1893 = vmatpush1.msra.mxu0 0.0
    %1894 = vmatprep.subr.mxu0 0.0
    %1895 = vmatpush1.msra.mxu0 0.0
    %1896 = vmatprep.subr.mxu0 0.0
    %1897 = vmatpush1.msra.mxu0 0.0
    %1898 = vmatprep.subr.mxu0 0.0
    %1899 = vmatpush1.msra.mxu0 0.0
    %1900 = vmatprep.subr.mxu0 0.0
    %1901 = vmatpush1.msra.mxu0 0.0
    %1902 = vmatprep.subr.mxu0 0.0
    %1903 = vmatpush1.msra.mxu0 0.0
    %1904 = vmatprep.subr.mxu0 0.0
    %1905 = vmatpush1.msra.mxu0 0.0
    %1906 = vmatprep.subr.mxu0 0.0
    %1907 = vmatpush1.msra.mxu0 0.0
    %1908 = vmatprep.subr.mxu0 0.0
    %1909 = vmatpush1.msra.mxu0 0.0
    %1910 = vmatprep.subr.mxu0 0.0
    %1911 = vmatpush1.msra.mxu0 0.0
    %1912 = vmatprep.subr.mxu0 0.0
    %1913 = vmatpush1.msra.mxu0 0.0
    %1914 = vmatprep.subr.mxu0 0.0
    %1915 = vmatpush1.msra.mxu0 0.0
    %1916 = vmatprep.subr.mxu0 0.0
    %1917 = vmatpush1.msra.mxu0 0.0
    %1918 = vmatprep.subr.mxu0 0.0
    %1919 = vmatpush1.msra.mxu0 0.0
    %1920 = vmatprep.subr.mxu0 0.0
    %1921 = vmatpush1.msra.mxu0 0.0
    %1922 = vmatprep.subr.mxu0 0.0
    %1923 = vmatpush1.msra.mxu0 0.0
    %1924 = vmatprep.subr.mxu0 0.0
    %1925 = vmatpush1.msra.mxu0 0.0
    %1926 = vmatprep.subr.mxu0 0.0
    %1927 = vmatpush1.msra.mxu0 0.0
    %1928 = vmatprep.mubr.f32.mxu0 0.0
    %1929 = vmatmul.mubr.f32.gmra.mrb[0].mxu0 %v1860
    %v1930 = vpop.f32.mrb[0].mxu0
    %v1931 = vadd.f32 %v1852, %v1930
    %v1932 = vpop.f32.mrb[0].mxu0
    %1933 = vmatprep.mubr.f32.mxu0 0.0
    %1934 = vmatmul.mubr.f32.gmra.mrb[0].mxu0 %v1862
    %v1935 = vpop.f32.mrb[0].mxu0
    %v1936 = vadd.f32 %v1852, %v1935
    %v1937 = vpop.f32.mrb[0].mxu0
    %1938 = vdwg.mxu0
    %v1939 = vmax.f32 %v1931, 0.0
    %v1940 = vmax.f32 %v1936, 0.0
    %v1941 = vld [vmem:[#allocation7] sm:$0xff]
    %v1942 = vld [vmem:[#allocation7 + $0x8] sm:$0xff]
    %v1943 = vld [vmem:[#allocation7 + $0x10] sm:$0xff]
    %v1944 = vld [vmem:[#allocation7 + $0x18] sm:$0xff]
    %v1945 = vld [vmem:[#allocation7 + $0x20] sm:$0xff]
    %v1946 = vld [vmem:[#allocation7 + $0x28] sm:$0xff]
    %v1947 = vld [vmem:[#allocation7 + $0x30] sm:$0xff]
    %v1948 = vld [vmem:[#allocation7 + $0x38] sm:$0xff]
    %v1949 = vld [vmem:[#allocation7 + $0x40] sm:$0xff]
    %v1950 = vld [vmem:[#allocation7 + $0x48] sm:$0xff]
    %v1951 = vld [vmem:[#allocation7 + $0x50] sm:$0xff]
    %v1952 = vld [vmem:[#allocation7 + $0x58] sm:$0xff]
    %v1953 = vld [vmem:[#allocation7 + $0x60] sm:$0xff]
    %v1954 = vld [vmem:[#allocation7 + $0x68] sm:$0xff]
    %v1955 = vld [vmem:[#allocation7 + $0x70] sm:$0xff]
    %v1956 = vld [vmem:[#allocation7 + $0x78] sm:$0xff]
    %v1957 = vld [vmem:[%s9] sm:$0x1]
    %v1959 = vlaneseq
    %v1960 = vshrl.u32 %v1959, 7
    %v1961 = vsub.s32 0, %v1960
    %v1962 = vrot.slane %v1957, %v1961
    %1964 = vmatprep.subr.mxu0 0.0
    %1965 = vmatpush1.msra.mxu0 %v1941
    %1966 = vmatprep.subr.mxu0 0.0
    %1967 = vmatpush1.msra.mxu0 %v1942
    %1968 = vmatprep.subr.mxu0 0.0
    %1969 = vmatpush1.msra.mxu0 %v1943
    %1970 = vmatprep.subr.mxu0 0.0
    %1971 = vmatpush1.msra.mxu0 %v1944
    %1972 = vmatprep.subr.mxu0 0.0
    %1973 = vmatpush1.msra.mxu0 %v1945
    %1974 = vmatprep.subr.mxu0 0.0
    %1975 = vmatpush1.msra.mxu0 %v1946
    %1976 = vmatprep.subr.mxu0 0.0
    %1977 = vmatpush1.msra.mxu0 %v1947
    %1978 = vmatprep.subr.mxu0 0.0
    %1979 = vmatpush1.msra.mxu0 %v1948
    %1980 = vmatprep.subr.mxu0 0.0
    %1981 = vmatpush1.msra.mxu0 %v1949
    %1982 = vmatprep.subr.mxu0 0.0
    %1983 = vmatpush1.msra.mxu0 %v1950
    %1984 = vmatprep.subr.mxu0 0.0
    %1985 = vmatpush1.msra.mxu0 %v1951
    %1986 = vmatprep.subr.mxu0 0.0
    %1987 = vmatpush1.msra.mxu0 %v1952
    %1988 = vmatprep.subr.mxu0 0.0
    %1989 = vmatpush1.msra.mxu0 %v1953
    %1990 = vmatprep.subr.mxu0 0.0
    %1991 = vmatpush1.msra.mxu0 %v1954
    %1992 = vmatprep.subr.mxu0 0.0
    %1993 = vmatpush1.msra.mxu0 %v1955
    %1994 = vmatprep.subr.mxu0 0.0
    %1995 = vmatpush1.msra.mxu0 %v1956
    %1996 = vmatprep.subr.mxu0 0.0
    %1997 = vmatpush1.msra.mxu0 0.0
    %1998 = vmatprep.subr.mxu0 0.0
    %1999 = vmatpush1.msra.mxu0 0.0
    %2000 = vmatprep.subr.mxu0 0.0
    %2001 = vmatpush1.msra.mxu0 0.0
    %2002 = vmatprep.subr.mxu0 0.0
    %2003 = vmatpush1.msra.mxu0 0.0
    %2004 = vmatprep.subr.mxu0 0.0
    %2005 = vmatpush1.msra.mxu0 0.0
    %2006 = vmatprep.subr.mxu0 0.0
    %2007 = vmatpush1.msra.mxu0 0.0
    %2008 = vmatprep.subr.mxu0 0.0
    %2009 = vmatpush1.msra.mxu0 0.0
    %2010 = vmatprep.subr.mxu0 0.0
    %2011 = vmatpush1.msra.mxu0 0.0
    %2012 = vmatprep.subr.mxu0 0.0
    %2013 = vmatpush1.msra.mxu0 0.0
    %2014 = vmatprep.subr.mxu0 0.0
    %2015 = vmatpush1.msra.mxu0 0.0
    %2016 = vmatprep.subr.mxu0 0.0
    %2017 = vmatpush1.msra.mxu0 0.0
    %2018 = vmatprep.subr.mxu0 0.0
    %2019 = vmatpush1.msra.mxu0 0.0
    %2020 = vmatprep.subr.mxu0 0.0
    %2021 = vmatpush1.msra.mxu0 0.0
    %2022 = vmatprep.subr.mxu0 0.0
    %2023 = vmatpush1.msra.mxu0 0.0
    %2024 = vmatprep.subr.mxu0 0.0
    %2025 = vmatpush1.msra.mxu0 0.0
    %2026 = vmatprep.subr.mxu0 0.0
    %2027 = vmatpush1.msra.mxu0 0.0
    %2028 = vmatprep.mubr.f32.mxu0 0.0
    %2029 = vmatmul.mubr.f32.gmra.mrb[0].mxu0 %v1939
    %v2030 = vpop.f32.mrb[0].mxu0
    %v2031 = vadd.f32 %v1962, %v2030
    %v2032 = vpop.f32.mrb[0].mxu0
    %2033 = vmatprep.mubr.f32.mxu0 0.0
    %2034 = vmatmul.mubr.f32.gmra.mrb[0].mxu0 %v1940
    %v2035 = vpop.f32.mrb[0].mxu0
    %v2036 = vadd.f32 %v1962, %v2035
    %v2037 = vpop.f32.mrb[0].mxu0
    %2038 = vdwg.mxu0
    %v2039 = vmax.f32 %v2031, 0.0
    %v2040 = vmax.f32 %v2036, 0.0
    %v2041 = vld [vmem:[#allocation8] sm:$0xff]
    %v2042 = vld [vmem:[#allocation8 + $0x8] sm:$0xff]
    %v2043 = vld [vmem:[#allocation8 + $0x10] sm:$0xff]
    %v2044 = vld [vmem:[#allocation8 + $0x18] sm:$0xff]
    %v2045 = vld [vmem:[#allocation8 + $0x20] sm:$0xff]
    %v2046 = vld [vmem:[#allocation8 + $0x28] sm:$0xff]
    %v2047 = vld [vmem:[#allocation8 + $0x30] sm:$0xff]
    %v2048 = vld [vmem:[#allocation8 + $0x38] sm:$0xff]
    %v2049 = vld [vmem:[#allocation8 + $0x40] sm:$0xff]
    %v2050 = vld [vmem:[#allocation8 + $0x48] sm:$0xff]
    %v2051 = vld [vmem:[#allocation8 + $0x50] sm:$0xff]
    %v2052 = vld [vmem:[#allocation8 + $0x58] sm:$0xff]
    %v2053 = vld [vmem:[#allocation8 + $0x60] sm:$0xff]
    %v2054 = vld [vmem:[#allocation8 + $0x68] sm:$0xff]
    %v2055 = vld [vmem:[#allocation8 + $0x70] sm:$0xff]
    %v2056 = vld [vmem:[#allocation8 + $0x78] sm:$0xff]
    %v2057 = vld [vmem:[%s11] sm:$0x1]
    %v2059 = vlaneseq
    %v2060 = vshrl.u32 %v2059, 7
    %v2061 = vsub.s32 0, %v2060
    %v2062 = vrot.slane %v2057, %v2061
    %2064 = vmatprep.subr.mxu0 0.0
    %2065 = vmatpush1.msra.mxu0 %v2041
    %2066 = vmatprep.subr.mxu0 0.0
    %2067 = vmatpush1.msra.mxu0 %v2042
    %2068 = vmatprep.subr.mxu0 0.0
    %2069 = vmatpush1.msra.mxu0 %v2043
    %2070 = vmatprep.subr.mxu0 0.0
    %2071 = vmatpush1.msra.mxu0 %v2044
    %2072 = vmatprep.subr.mxu0 0.0
    %2073 = vmatpush1.msra.mxu0 %v2045
    %2074 = vmatprep.subr.mxu0 0.0
    %2075 = vmatpush1.msra.mxu0 %v2046
    %2076 = vmatprep.subr.mxu0 0.0
    %2077 = vmatpush1.msra.mxu0 %v2047
    %2078 = vmatprep.subr.mxu0 0.0
    %2079 = vmatpush1.msra.mxu0 %v2048
    %2080 = vmatprep.subr.mxu0 0.0
    %2081 = vmatpush1.msra.mxu0 %v2049
    %2082 = vmatprep.subr.mxu0 0.0
    %2083 = vmatpush1.msra.mxu0 %v2050
    %2084 = vmatprep.subr.mxu0 0.0
    %2085 = vmatpush1.msra.mxu0 %v2051
    %2086 = vmatprep.subr.mxu0 0.0
    %2087 = vmatpush1.msra.mxu0 %v2052
    %2088 = vmatprep.subr.mxu0 0.0
    %2089 = vmatpush1.msra.mxu0 %v2053
    %2090 = vmatprep.subr.mxu0 0.0
    %2091 = vmatpush1.msra.mxu0 %v2054
    %2092 = vmatprep.subr.mxu0 0.0
    %2093 = vmatpush1.msra.mxu0 %v2055
    %2094 = vmatprep.subr.mxu0 0.0
    %2095 = vmatpush1.msra.mxu0 %v2056
    %2096 = vmatprep.subr.mxu0 0.0
    %2097 = vmatpush1.msra.mxu0 0.0
    %2098 = vmatprep.subr.mxu0 0.0
    %2099 = vmatpush1.msra.mxu0 0.0
    %2100 = vmatprep.subr.mxu0 0.0
    %2101 = vmatpush1.msra.mxu0 0.0
    %2102 = vmatprep.subr.mxu0 0.0
    %2103 = vmatpush1.msra.mxu0 0.0
    %2104 = vmatprep.subr.mxu0 0.0
    %2105 = vmatpush1.msra.mxu0 0.0
    %2106 = vmatprep.subr.mxu0 0.0
    %2107 = vmatpush1.msra.mxu0 0.0
    %2108 = vmatprep.subr.mxu0 0.0
    %2109 = vmatpush1.msra.mxu0 0.0
    %2110 = vmatprep.subr.mxu0 0.0
    %2111 = vmatpush1.msra.mxu0 0.0
    %2112 = vmatprep.subr.mxu0 0.0
    %2113 = vmatpush1.msra.mxu0 0.0
    %2114 = vmatprep.subr.mxu0 0.0
    %2115 = vmatpush1.msra.mxu0 0.0
    %2116 = vmatprep.subr.mxu0 0.0
    %2117 = vmatpush1.msra.mxu0 0.0
    %2118 = vmatprep.subr.mxu0 0.0
    %2119 = vmatpush1.msra.mxu0 0.0
    %2120 = vmatprep.subr.mxu0 0.0
    %2121 = vmatpush1.msra.mxu0 0.0
    %2122 = vmatprep.subr.mxu0 0.0
    %2123 = vmatpush1.msra.mxu0 0.0
    %2124 = vmatprep.subr.mxu0 0.0
    %2125 = vmatpush1.msra.mxu0 0.0
    %2126 = vmatprep.subr.mxu0 0.0
    %2127 = vmatpush1.msra.mxu0 0.0
    %2128 = vmatprep.mubr.f32.mxu0 0.0
    %2129 = vmatmul.mubr.f32.gmra.mrb[0].mxu0 %v2039
    %v2130 = vpop.f32.mrb[0].mxu0
    %v2131 = vadd.f32 %v2062, %v2130
    %v2132 = vpop.f32.mrb[0].mxu0
    %2133 = vmatprep.mubr.f32.mxu0 0.0
    %2134 = vmatmul.mubr.f32.gmra.mrb[0].mxu0 %v2040
    %v2135 = vpop.f32.mrb[0].mxu0
    %v2136 = vadd.f32 %v2062, %v2135
    %v2137 = vpop.f32.mrb[0].mxu0
    %2138 = vdwg.mxu0
    %2139 = vst [vmem:[#allocation10] sm:$0xff] %v2131
    %2140 = vst [vmem:[#allocation10 + $0x8] sm:$0xff] %v2136
    // Predicated region
    $region66: #{tpu_custom_call.1} parent=1 // pred_check
      _
    $region67: #{tpu_custom_call.1} parent=1 // pred_check_branch
      %2142 = sbr.rel (0) target = $region69
    $region68: #{tpu_custom_call.1} parent=1 // pred_region
      %s2144 = ssub.s32 256, 256
      %2145 = vsyncadd [#allocation4], %s2144
      %s2146 = sshll.u32 [#allocation10], 4
      %s2147 = int_to_ptr.vmem [resolvable:$true] %s2146
      %2152 = dma.vmem_to_hbm [thread:$0]  %s2147, 256, %s12, [#allocation4], 128, 128, 8
    $region69: #{tpu_custom_call.1} parent=1 // pred_fallthru
      _
    // Predicated region
    $region70: #{tpu_custom_call.1} parent=1 // pred_check
      _
    $region71: #{tpu_custom_call.1} parent=1 // pred_check_branch
      %2154 = sbr.rel (0) target = $region73
    $region72: #{tpu_custom_call.1} parent=1 // pred_region
      %2155 = dma.done [#allocation4], 256
    $region73: #{tpu_custom_call.1} parent=1 // pred_fallthru
      _
    %2156 = vsyncpa [#allocation3], 1
    %2157 = vsyncpa [#allocation6], 1
    %2158 = vsyncpa [#allocation9], 1
    %2159 = vsyncpa [#allocation4], 1

</llo_original>
